<compile_context>
chip_gen: v6e
topology: v6e:2x2x1
jax: 0.10.0
libtpu: 0.0.40
codegen_flags: <defaults>
</compile_context>

<pallas_src>
import functools
import math

import jax
import jax.numpy as jnp
from jax import lax
from jax.experimental import pallas as pl
from jax.experimental.pallas import tpu as pltpu


def _dsconv_kernel(x_ref, wdw_ref, b1_ref, wpw_ref, b2_ref, o_ref, *, W):
    """One grid step processes NB images, spatial flattened onto lanes.

    x_ref  : (NB, C, H*W)     VMEM  input tile (H*W lanes -> lane-dense)
    wdw_ref: (C, 9)           SMEM  depthwise 3x3 taps, BN1 scale pre-folded
    b1_ref : (C,)             SMEM  BN1 bias (beta - mean*scale)
    wpw_ref: (Cout, C)        SMEM  pointwise weights, BN2 scale pre-folded
    b2_ref : (Cout,)          SMEM  BN2 bias
    o_ref  : (NB, Cout, H*W)  VMEM  output tile; valid results live at flat
                                    p = i*W + j with i < H-2, j < W-2 (wrapper
                                    slices them out)

    Tap (di, dj) of output pixel (i, j) needs x[i+di, j+dj] =
    x_flat[p + di*W + dj].  For every VALID output p <= (H-3)*W + (W-3) and
    offset off <= 2*W + 2 we have p + off <= H*W - 1, so a lane rotation by
    (H*W - off) (pltpu.roll, XLU slot) delivers exactly x_flat[p + off]; the
    wraparound only lands on border positions that are discarded.
    """
    NB, C, HW = x_ref.shape
    _, Cout, _ = o_ref.shape
    SB = math.gcd(NB, 8)            # images per vector op (sublane axis)
    n_sub = NB // SB

    # Hoist all SMEM scalar reads out of the loop (live in scalar regs).
    wdw = [[wdw_ref[c, k] for k in range(9)] for c in range(C)]
    b1 = [b1_ref[c] for c in range(C)]
    wpw = [[wpw_ref[co, c] for c in range(C)] for co in range(Cout)]
    b2 = [b2_ref[co] for co in range(Cout)]

    def body(s, carry):
        base = pl.multiple_of(s * SB, SB)

        # ---- depthwise 3x3, stride 1, VALID (+ folded BN1 bias + ReLU) ----
        ys = []
        for c in range(C):
            xc = x_ref[pl.ds(base, SB), c, :].astype(jnp.float32)   # (SB, HW)
            acc = xc * wdw[c][0]
            for k in range(1, 9):
                di, dj = divmod(k, 3)
                off = di * W + dj
                # shifted[p] = xc[(p + off) % HW]  (XLU rotate, not VALU)
                shifted = pltpu.roll(xc, shift=HW - off, axis=1)
                acc = acc + shifted * wdw[c][k]
            ys.append(jnp.maximum(acc + b1[c], 0.0))

        # ---- pointwise 1x1 (+ folded BN2 bias + ReLU) ----
        # C=4/Cout=8: VPU broadcast-mul-sum; each store is an unmasked
        # lane-dense (SB, HW) slab.
        for co in range(Cout):
            acc = ys[0] * wpw[co][0]
            for c in range(1, C):
                acc = acc + ys[c] * wpw[co][c]
            o_ref[pl.ds(base, SB), co, :] = jnp.maximum(
                acc + b2[co], 0.0).astype(o_ref.dtype)
        return carry

    lax.fori_loop(0, n_sub, body, 0)


def dsconv_pallas(x_nchw, w_dw, w_pw, bn1, bn2, eps=1e-5, images_per_block=64):
    """x_nchw: (N,C,H,W); w_dw: (C,1,3,3); w_pw: (Cout,C,1,1);
    bn1/bn2: (gamma, beta, running_mean, running_var).  Inference-mode BN."""
    N, C, H, W = x_nchw.shape
    Cout = w_pw.shape[0]
    Ho, Wo = H - 2, W - 2            # 3x3, stride 1, padding 0
    HW = H * W
    nb = min(images_per_block, N)
    assert N % nb == 0, "batch must be divisible by images_per_block"

    g1, be1, m1, v1 = bn1
    g2, be2, m2, v2 = bn2
    inv1 = (g1 / jnp.sqrt(v1 + eps)).astype(jnp.float32)          # (C,)
    inv2 = (g2 / jnp.sqrt(v2 + eps)).astype(jnp.float32)          # (Cout,)

    # Fold BN scales into the conv weights (exact: ReLU comes after the bias
    # add), so the kernel only does multiply-add + max per tap.
    wdw = (w_dw[:, 0, :, :].astype(jnp.float32)
           * inv1[:, None, None]).reshape(C, 9)                   # (C, 9)
    b1 = (be1 - m1 * inv1).astype(jnp.float32)                    # (C,)
    wpw = w_pw[:, :, 0, 0].astype(jnp.float32) * inv2[:, None]    # (Cout, C)
    b2 = (be2 - m2 * inv2).astype(jnp.float32)                    # (Cout,)

    # Free reshape (contiguous NCHW), no transpose / HBM round trip.
    x_flat = x_nchw.reshape(N, C, HW)

    out_flat = pl.pallas_call(
        functools.partial(_dsconv_kernel, W=W),
        out_shape=jax.ShapeDtypeStruct((N, Cout, HW), x_nchw.dtype),
        grid=(N // nb,),
        in_specs=[
            pl.BlockSpec((nb, C, HW), lambda n: (n, 0, 0)),
            pl.BlockSpec(memory_space=pltpu.MemorySpace.SMEM),    # wdw (C,9)
            pl.BlockSpec(memory_space=pltpu.MemorySpace.SMEM),    # b1  (C,)
            pl.BlockSpec(memory_space=pltpu.MemorySpace.SMEM),    # wpw (Cout,C)
            pl.BlockSpec(memory_space=pltpu.MemorySpace.SMEM),    # b2  (Cout,)
        ],
        out_specs=pl.BlockSpec((nb, Cout, HW), lambda n: (n, 0, 0)),
        compiler_params=pltpu.CompilerParams(
            # "parallel" lets v7x shard the batch grid axis across its 2 TCs
            # (keep N // nb >= 2); v5e/v6e are single-TC so it is a no-op.
            dimension_semantics=("parallel",)),
    )(x_flat, wdw, b1, wpw, b2)

    # Border lanes hold wrapped garbage; slice out the VALID-conv window.
    return out_flat.reshape(N, Cout, H, W)[:, :, :Ho, :Wo]


def dsconv_ref(x, w_dw, w_pw, bn1, bn2, eps=1e-5):
    """Pure-JAX (XLA conv) reference mirroring the PyTorch block (eval-mode BN)."""
    dn = lax.conv_dimension_numbers(x.shape, w_dw.shape, ("NCHW", "OIHW", "NCHW"))
    y = lax.conv_general_dilated(x, w_dw, (1, 1), "VALID",
                                 dimension_numbers=dn,
                                 feature_group_count=x.shape[1])
    g1, be1, m1, v1 = bn1
    y = (y - m1[None, :, None, None]) / jnp.sqrt(v1[None, :, None, None] + eps)
    y = y * g1[None, :, None, None] + be1[None, :, None, None]
    y = jnp.maximum(y, 0.0)

    dn2 = lax.conv_dimension_numbers(y.shape, w_pw.shape, ("NCHW", "OIHW", "NCHW"))
    y = lax.conv_general_dilated(y, w_pw, (1, 1), "VALID", dimension_numbers=dn2)
    g2, be2, m2, v2 = bn2
    y = (y - m2[None, :, None, None]) / jnp.sqrt(v2[None, :, None, None] + eps)
    y = y * g2[None, :, None, None] + be2[None, :, None, None]
    return jnp.maximum(y, 0.0)


def _make_inputs(N, C, H, W, Cout, key):
    keys = jax.random.split(key, 10)
    x = jax.random.normal(keys[0], (N, C, H, W), jnp.float32)
    w_dw = jax.random.normal(keys[1], (C, 1, 3, 3), jnp.float32) * 0.3
    w_pw = jax.random.normal(keys[2], (Cout, C, 1, 1), jnp.float32) * 0.3
    bn1 = (
        1.0 + 0.1 * jax.random.normal(keys[3], (C,), jnp.float32),     # gamma
        0.1 * jax.random.normal(keys[4], (C,), jnp.float32),           # beta
        0.1 * jax.random.normal(keys[5], (C,), jnp.float32),           # mean
        jnp.abs(jax.random.normal(keys[6], (C,), jnp.float32)) + 0.5,  # var
    )
    bn2 = (
        1.0 + 0.1 * jax.random.normal(keys[7], (Cout,), jnp.float32),
        0.1 * jax.random.normal(keys[8], (Cout,), jnp.float32),
        0.1 * jax.random.normal(keys[9], (Cout,), jnp.float32),
        jnp.abs(jax.random.normal(keys[0], (Cout,), jnp.float32)) + 0.5,
    )
    return x, w_dw, w_pw, bn1, bn2


if __name__ == "__main__":
    C, H, W, Cout = 4, 16, 16, 8
    key = jax.random.PRNGKey(0)

    # (1) Small sanity config (module-sized tiny block).
    x, w_dw, w_pw, bn1, bn2 = _make_inputs(2, C, H, W, Cout, key)
    out = jax.block_until_ready(dsconv_pallas(x, w_dw, w_pw, bn1, bn2))
    ref = dsconv_ref(x, w_dw, w_pw, bn1, bn2)
    assert out.shape == (2, Cout, H - 2, W - 2), out.shape
    assert jnp.allclose(out, ref, atol=1e-3, rtol=1e-3), \
        float(jnp.max(jnp.abs(out - ref)))

    # (2) Performance-shaped config: 64 images / grid step (~256 KiB in,
    #     ~512 KiB out per step), 2 grid steps so v7x can use both TCs.
    x, w_dw, w_pw, bn1, bn2 = _make_inputs(128, C, H, W, Cout, key)
    out = jax.block_until_ready(
        dsconv_pallas(x, w_dw, w_pw, bn1, bn2, images_per_block=64))
    ref = dsconv_ref(x, w_dw, w_pw, bn1, bn2)
    assert out.shape == (128, Cout, H - 2, W - 2), out.shape
    assert jnp.allclose(out, ref, atol=1e-3, rtol=1e-3), \
        float(jnp.max(jnp.abs(out - ref)))

    print("KERNEL_OK")
</pallas_src>

<mosaic_0001>
module attributes {stable_mosaic.version = 11 : i64} {
  func.func @_dsconv_kernel(%arg0: i32, %arg1: memref<2x4x256xf32, #tpu.memory_space<vmem>>, %arg2: memref<4x9xf32, #tpu.memory_space<smem>>, %arg3: memref<4xf32, #tpu.memory_space<smem>>, %arg4: memref<8x4xf32, #tpu.memory_space<smem>>, %arg5: memref<8xf32, #tpu.memory_space<smem>>, %arg6: memref<2x8x256xf32, #tpu.memory_space<vmem>>) attributes {dimension_semantics = [#tpu.dimension_semantics<parallel>], iteration_bounds = array<i64: 1>, scalar_prefetch = 0 : i64, scratch_operands = 0 : i64, tpu.core_type = #tpu.core_type<tc>, window_params = [{transform_indices = @transform_0, window_bounds = array<i64: 2, 4, 256>}, {transform_indices = @transform_1, window_bounds = array<i64: 4, 9>}, {transform_indices = @transform_2, window_bounds = array<i64: 4>}, {transform_indices = @transform_3, window_bounds = array<i64: 8, 4>}, {transform_indices = @transform_4, window_bounds = array<i64: 8>}, {transform_indices = @transform_5, window_bounds = array<i64: 2, 8, 256>}]} {
    %c0 = arith.constant 0 : index
    %c0_0 = arith.constant 0 : index
    %0 = memref.load %arg2[%c0, %c0_0] : memref<4x9xf32, #tpu.memory_space<smem>>
    %c0_1 = arith.constant 0 : index
    %c1 = arith.constant 1 : index
    %1 = memref.load %arg2[%c0_1, %c1] : memref<4x9xf32, #tpu.memory_space<smem>>
    %c0_2 = arith.constant 0 : index
    %c2 = arith.constant 2 : index
    %2 = memref.load %arg2[%c0_2, %c2] : memref<4x9xf32, #tpu.memory_space<smem>>
    %c0_3 = arith.constant 0 : index
    %c3 = arith.constant 3 : index
    %3 = memref.load %arg2[%c0_3, %c3] : memref<4x9xf32, #tpu.memory_space<smem>>
    %c0_4 = arith.constant 0 : index
    %c4 = arith.constant 4 : index
    %4 = memref.load %arg2[%c0_4, %c4] : memref<4x9xf32, #tpu.memory_space<smem>>
    %c0_5 = arith.constant 0 : index
    %c5 = arith.constant 5 : index
    %5 = memref.load %arg2[%c0_5, %c5] : memref<4x9xf32, #tpu.memory_space<smem>>
    %c0_6 = arith.constant 0 : index
    %c6 = arith.constant 6 : index
    %6 = memref.load %arg2[%c0_6, %c6] : memref<4x9xf32, #tpu.memory_space<smem>>
    %c0_7 = arith.constant 0 : index
    %c7 = arith.constant 7 : index
    %7 = memref.load %arg2[%c0_7, %c7] : memref<4x9xf32, #tpu.memory_space<smem>>
    %c0_8 = arith.constant 0 : index
    %c8 = arith.constant 8 : index
    %8 = memref.load %arg2[%c0_8, %c8] : memref<4x9xf32, #tpu.memory_space<smem>>
    %c1_9 = arith.constant 1 : index
    %c0_10 = arith.constant 0 : index
    %9 = memref.load %arg2[%c1_9, %c0_10] : memref<4x9xf32, #tpu.memory_space<smem>>
    %c1_11 = arith.constant 1 : index
    %c1_12 = arith.constant 1 : index
    %10 = memref.load %arg2[%c1_11, %c1_12] : memref<4x9xf32, #tpu.memory_space<smem>>
    %c1_13 = arith.constant 1 : index
    %c2_14 = arith.constant 2 : index
    %11 = memref.load %arg2[%c1_13, %c2_14] : memref<4x9xf32, #tpu.memory_space<smem>>
    %c1_15 = arith.constant 1 : index
    %c3_16 = arith.constant 3 : index
    %12 = memref.load %arg2[%c1_15, %c3_16] : memref<4x9xf32, #tpu.memory_space<smem>>
    %c1_17 = arith.constant 1 : index
    %c4_18 = arith.constant 4 : index
    %13 = memref.load %arg2[%c1_17, %c4_18] : memref<4x9xf32, #tpu.memory_space<smem>>
    %c1_19 = arith.constant 1 : index
    %c5_20 = arith.constant 5 : index
    %14 = memref.load %arg2[%c1_19, %c5_20] : memref<4x9xf32, #tpu.memory_space<smem>>
    %c1_21 = arith.constant 1 : index
    %c6_22 = arith.constant 6 : index
    %15 = memref.load %arg2[%c1_21, %c6_22] : memref<4x9xf32, #tpu.memory_space<smem>>
    %c1_23 = arith.constant 1 : index
    %c7_24 = arith.constant 7 : index
    %16 = memref.load %arg2[%c1_23, %c7_24] : memref<4x9xf32, #tpu.memory_space<smem>>
    %c1_25 = arith.constant 1 : index
    %c8_26 = arith.constant 8 : index
    %17 = memref.load %arg2[%c1_25, %c8_26] : memref<4x9xf32, #tpu.memory_space<smem>>
    %c2_27 = arith.constant 2 : index
    %c0_28 = arith.constant 0 : index
    %18 = memref.load %arg2[%c2_27, %c0_28] : memref<4x9xf32, #tpu.memory_space<smem>>
    %c2_29 = arith.constant 2 : index
    %c1_30 = arith.constant 1 : index
    %19 = memref.load %arg2[%c2_29, %c1_30] : memref<4x9xf32, #tpu.memory_space<smem>>
    %c2_31 = arith.constant 2 : index
    %c2_32 = arith.constant 2 : index
    %20 = memref.load %arg2[%c2_31, %c2_32] : memref<4x9xf32, #tpu.memory_space<smem>>
    %c2_33 = arith.constant 2 : index
    %c3_34 = arith.constant 3 : index
    %21 = memref.load %arg2[%c2_33, %c3_34] : memref<4x9xf32, #tpu.memory_space<smem>>
    %c2_35 = arith.constant 2 : index
    %c4_36 = arith.constant 4 : index
    %22 = memref.load %arg2[%c2_35, %c4_36] : memref<4x9xf32, #tpu.memory_space<smem>>
    %c2_37 = arith.constant 2 : index
    %c5_38 = arith.constant 5 : index
    %23 = memref.load %arg2[%c2_37, %c5_38] : memref<4x9xf32, #tpu.memory_space<smem>>
    %c2_39 = arith.constant 2 : index
    %c6_40 = arith.constant 6 : index
    %24 = memref.load %arg2[%c2_39, %c6_40] : memref<4x9xf32, #tpu.memory_space<smem>>
    %c2_41 = arith.constant 2 : index
    %c7_42 = arith.constant 7 : index
    %25 = memref.load %arg2[%c2_41, %c7_42] : memref<4x9xf32, #tpu.memory_space<smem>>
    %c2_43 = arith.constant 2 : index
    %c8_44 = arith.constant 8 : index
    %26 = memref.load %arg2[%c2_43, %c8_44] : memref<4x9xf32, #tpu.memory_space<smem>>
    %c3_45 = arith.constant 3 : index
    %c0_46 = arith.constant 0 : index
    %27 = memref.load %arg2[%c3_45, %c0_46] : memref<4x9xf32, #tpu.memory_space<smem>>
    %c3_47 = arith.constant 3 : index
    %c1_48 = arith.constant 1 : index
    %28 = memref.load %arg2[%c3_47, %c1_48] : memref<4x9xf32, #tpu.memory_space<smem>>
    %c3_49 = arith.constant 3 : index
    %c2_50 = arith.constant 2 : index
    %29 = memref.load %arg2[%c3_49, %c2_50] : memref<4x9xf32, #tpu.memory_space<smem>>
    %c3_51 = arith.constant 3 : index
    %c3_52 = arith.constant 3 : index
    %30 = memref.load %arg2[%c3_51, %c3_52] : memref<4x9xf32, #tpu.memory_space<smem>>
    %c3_53 = arith.constant 3 : index
    %c4_54 = arith.constant 4 : index
    %31 = memref.load %arg2[%c3_53, %c4_54] : memref<4x9xf32, #tpu.memory_space<smem>>
    %c3_55 = arith.constant 3 : index
    %c5_56 = arith.constant 5 : index
    %32 = memref.load %arg2[%c3_55, %c5_56] : memref<4x9xf32, #tpu.memory_space<smem>>
    %c3_57 = arith.constant 3 : index
    %c6_58 = arith.constant 6 : index
    %33 = memref.load %arg2[%c3_57, %c6_58] : memref<4x9xf32, #tpu.memory_space<smem>>
    %c3_59 = arith.constant 3 : index
    %c7_60 = arith.constant 7 : index
    %34 = memref.load %arg2[%c3_59, %c7_60] : memref<4x9xf32, #tpu.memory_space<smem>>
    %c3_61 = arith.constant 3 : index
    %c8_62 = arith.constant 8 : index
    %35 = memref.load %arg2[%c3_61, %c8_62] : memref<4x9xf32, #tpu.memory_space<smem>>
    %c0_63 = arith.constant 0 : index
    %36 = memref.load %arg3[%c0_63] : memref<4xf32, #tpu.memory_space<smem>>
    %c1_64 = arith.constant 1 : index
    %37 = memref.load %arg3[%c1_64] : memref<4xf32, #tpu.memory_space<smem>>
    %c2_65 = arith.constant 2 : index
    %38 = memref.load %arg3[%c2_65] : memref<4xf32, #tpu.memory_space<smem>>
    %c3_66 = arith.constant 3 : index
    %39 = memref.load %arg3[%c3_66] : memref<4xf32, #tpu.memory_space<smem>>
    %c0_67 = arith.constant 0 : index
    %c0_68 = arith.constant 0 : index
    %40 = memref.load %arg4[%c0_67, %c0_68] : memref<8x4xf32, #tpu.memory_space<smem>>
    %c0_69 = arith.constant 0 : index
    %c1_70 = arith.constant 1 : index
    %41 = memref.load %arg4[%c0_69, %c1_70] : memref<8x4xf32, #tpu.memory_space<smem>>
    %c0_71 = arith.constant 0 : index
    %c2_72 = arith.constant 2 : index
    %42 = memref.load %arg4[%c0_71, %c2_72] : memref<8x4xf32, #tpu.memory_space<smem>>
    %c0_73 = arith.constant 0 : index
    %c3_74 = arith.constant 3 : index
    %43 = memref.load %arg4[%c0_73, %c3_74] : memref<8x4xf32, #tpu.memory_space<smem>>
    %c1_75 = arith.constant 1 : index
    %c0_76 = arith.constant 0 : index
    %44 = memref.load %arg4[%c1_75, %c0_76] : memref<8x4xf32, #tpu.memory_space<smem>>
    %c1_77 = arith.constant 1 : index
    %c1_78 = arith.constant 1 : index
    %45 = memref.load %arg4[%c1_77, %c1_78] : memref<8x4xf32, #tpu.memory_space<smem>>
    %c1_79 = arith.constant 1 : index
    %c2_80 = arith.constant 2 : index
    %46 = memref.load %arg4[%c1_79, %c2_80] : memref<8x4xf32, #tpu.memory_space<smem>>
    %c1_81 = arith.constant 1 : index
    %c3_82 = arith.constant 3 : index
    %47 = memref.load %arg4[%c1_81, %c3_82] : memref<8x4xf32, #tpu.memory_space<smem>>
    %c2_83 = arith.constant 2 : index
    %c0_84 = arith.constant 0 : index
    %48 = memref.load %arg4[%c2_83, %c0_84] : memref<8x4xf32, #tpu.memory_space<smem>>
    %c2_85 = arith.constant 2 : index
    %c1_86 = arith.constant 1 : index
    %49 = memref.load %arg4[%c2_85, %c1_86] : memref<8x4xf32, #tpu.memory_space<smem>>
    %c2_87 = arith.constant 2 : index
    %c2_88 = arith.constant 2 : index
    %50 = memref.load %arg4[%c2_87, %c2_88] : memref<8x4xf32, #tpu.memory_space<smem>>
    %c2_89 = arith.constant 2 : index
    %c3_90 = arith.constant 3 : index
    %51 = memref.load %arg4[%c2_89, %c3_90] : memref<8x4xf32, #tpu.memory_space<smem>>
    %c3_91 = arith.constant 3 : index
    %c0_92 = arith.constant 0 : index
    %52 = memref.load %arg4[%c3_91, %c0_92] : memref<8x4xf32, #tpu.memory_space<smem>>
    %c3_93 = arith.constant 3 : index
    %c1_94 = arith.constant 1 : index
    %53 = memref.load %arg4[%c3_93, %c1_94] : memref<8x4xf32, #tpu.memory_space<smem>>
    %c3_95 = arith.constant 3 : index
    %c2_96 = arith.constant 2 : index
    %54 = memref.load %arg4[%c3_95, %c2_96] : memref<8x4xf32, #tpu.memory_space<smem>>
    %c3_97 = arith.constant 3 : index
    %c3_98 = arith.constant 3 : index
    %55 = memref.load %arg4[%c3_97, %c3_98] : memref<8x4xf32, #tpu.memory_space<smem>>
    %c4_99 = arith.constant 4 : index
    %c0_100 = arith.constant 0 : index
    %56 = memref.load %arg4[%c4_99, %c0_100] : memref<8x4xf32, #tpu.memory_space<smem>>
    %c4_101 = arith.constant 4 : index
    %c1_102 = arith.constant 1 : index
    %57 = memref.load %arg4[%c4_101, %c1_102] : memref<8x4xf32, #tpu.memory_space<smem>>
    %c4_103 = arith.constant 4 : index
    %c2_104 = arith.constant 2 : index
    %58 = memref.load %arg4[%c4_103, %c2_104] : memref<8x4xf32, #tpu.memory_space<smem>>
    %c4_105 = arith.constant 4 : index
    %c3_106 = arith.constant 3 : index
    %59 = memref.load %arg4[%c4_105, %c3_106] : memref<8x4xf32, #tpu.memory_space<smem>>
    %c5_107 = arith.constant 5 : index
    %c0_108 = arith.constant 0 : index
    %60 = memref.load %arg4[%c5_107, %c0_108] : memref<8x4xf32, #tpu.memory_space<smem>>
    %c5_109 = arith.constant 5 : index
    %c1_110 = arith.constant 1 : index
    %61 = memref.load %arg4[%c5_109, %c1_110] : memref<8x4xf32, #tpu.memory_space<smem>>
    %c5_111 = arith.constant 5 : index
    %c2_112 = arith.constant 2 : index
    %62 = memref.load %arg4[%c5_111, %c2_112] : memref<8x4xf32, #tpu.memory_space<smem>>
    %c5_113 = arith.constant 5 : index
    %c3_114 = arith.constant 3 : index
    %63 = memref.load %arg4[%c5_113, %c3_114] : memref<8x4xf32, #tpu.memory_space<smem>>
    %c6_115 = arith.constant 6 : index
    %c0_116 = arith.constant 0 : index
    %64 = memref.load %arg4[%c6_115, %c0_116] : memref<8x4xf32, #tpu.memory_space<smem>>
    %c6_117 = arith.constant 6 : index
    %c1_118 = arith.constant 1 : index
    %65 = memref.load %arg4[%c6_117, %c1_118] : memref<8x4xf32, #tpu.memory_space<smem>>
    %c6_119 = arith.constant 6 : index
    %c2_120 = arith.constant 2 : index
    %66 = memref.load %arg4[%c6_119, %c2_120] : memref<8x4xf32, #tpu.memory_space<smem>>
    %c6_121 = arith.constant 6 : index
    %c3_122 = arith.constant 3 : index
    %67 = memref.load %arg4[%c6_121, %c3_122] : memref<8x4xf32, #tpu.memory_space<smem>>
    %c7_123 = arith.constant 7 : index
    %c0_124 = arith.constant 0 : index
    %68 = memref.load %arg4[%c7_123, %c0_124] : memref<8x4xf32, #tpu.memory_space<smem>>
    %c7_125 = arith.constant 7 : index
    %c1_126 = arith.constant 1 : index
    %69 = memref.load %arg4[%c7_125, %c1_126] : memref<8x4xf32, #tpu.memory_space<smem>>
    %c7_127 = arith.constant 7 : index
    %c2_128 = arith.constant 2 : index
    %70 = memref.load %arg4[%c7_127, %c2_128] : memref<8x4xf32, #tpu.memory_space<smem>>
    %c7_129 = arith.constant 7 : index
    %c3_130 = arith.constant 3 : index
    %71 = memref.load %arg4[%c7_129, %c3_130] : memref<8x4xf32, #tpu.memory_space<smem>>
    %c0_131 = arith.constant 0 : index
    %72 = memref.load %arg5[%c0_131] : memref<8xf32, #tpu.memory_space<smem>>
    %c1_132 = arith.constant 1 : index
    %73 = memref.load %arg5[%c1_132] : memref<8xf32, #tpu.memory_space<smem>>
    %c2_133 = arith.constant 2 : index
    %74 = memref.load %arg5[%c2_133] : memref<8xf32, #tpu.memory_space<smem>>
    %c3_134 = arith.constant 3 : index
    %75 = memref.load %arg5[%c3_134] : memref<8xf32, #tpu.memory_space<smem>>
    %c4_135 = arith.constant 4 : index
    %76 = memref.load %arg5[%c4_135] : memref<8xf32, #tpu.memory_space<smem>>
    %c5_136 = arith.constant 5 : index
    %77 = memref.load %arg5[%c5_136] : memref<8xf32, #tpu.memory_space<smem>>
    %c6_137 = arith.constant 6 : index
    %78 = memref.load %arg5[%c6_137] : memref<8xf32, #tpu.memory_space<smem>>
    %c7_138 = arith.constant 7 : index
    %79 = memref.load %arg5[%c7_138] : memref<8xf32, #tpu.memory_space<smem>>
    %c0_i32 = arith.constant 0 : i32
    %c2_i32 = arith.constant 2 : i32
    %80 = arith.muli %c0_i32, %c2_i32 : i32
    %81 = tpu.assume_multiple %80, 2 : i32
    %82 = arith.index_cast %81 : i32 to index
    %c0_139 = arith.constant 0 : index
    %c0_140 = arith.constant 0 : index
    %83 = vector.load %arg1[%82, %c0_139, %c0_140] : memref<2x4x256xf32, #tpu.memory_space<vmem>>, vector<2x1x256xf32>
    %84 = vector.shape_cast %83 : vector<2x1x256xf32> to vector<2x256xf32>
    %85 = vector.broadcast %0 : f32 to vector<2x256xf32>
    %86 = arith.mulf %84, %85 : vector<2x256xf32>
    %c255_i32 = arith.constant 255 : i32
    %87 = tpu.dynamic_rotate %84 by %c255_i32 dim 1 : vector<2x256xf32>, i32 -> vector<2x256xf32>
    %88 = vector.broadcast %1 : f32 to vector<2x256xf32>
    %89 = arith.mulf %87, %88 : vector<2x256xf32>
    %90 = arith.addf %86, %89 : vector<2x256xf32>
    %c254_i32 = arith.constant 254 : i32
    %91 = tpu.dynamic_rotate %84 by %c254_i32 dim 1 : vector<2x256xf32>, i32 -> vector<2x256xf32>
    %92 = vector.broadcast %2 : f32 to vector<2x256xf32>
    %93 = arith.mulf %91, %92 : vector<2x256xf32>
    %94 = arith.addf %90, %93 : vector<2x256xf32>
    %c240_i32 = arith.constant 240 : i32
    %95 = tpu.dynamic_rotate %84 by %c240_i32 dim 1 : vector<2x256xf32>, i32 -> vector<2x256xf32>
    %96 = vector.broadcast %3 : f32 to vector<2x256xf32>
    %97 = arith.mulf %95, %96 : vector<2x256xf32>
    %98 = arith.addf %94, %97 : vector<2x256xf32>
    %c239_i32 = arith.constant 239 : i32
    %99 = tpu.dynamic_rotate %84 by %c239_i32 dim 1 : vector<2x256xf32>, i32 -> vector<2x256xf32>
    %100 = vector.broadcast %4 : f32 to vector<2x256xf32>
    %101 = arith.mulf %99, %100 : vector<2x256xf32>
    %102 = arith.addf %98, %101 : vector<2x256xf32>
    %c238_i32 = arith.constant 238 : i32
    %103 = tpu.dynamic_rotate %84 by %c238_i32 dim 1 : vector<2x256xf32>, i32 -> vector<2x256xf32>
    %104 = vector.broadcast %5 : f32 to vector<2x256xf32>
    %105 = arith.mulf %103, %104 : vector<2x256xf32>
    %106 = arith.addf %102, %105 : vector<2x256xf32>
    %c224_i32 = arith.constant 224 : i32
    %107 = tpu.dynamic_rotate %84 by %c224_i32 dim 1 : vector<2x256xf32>, i32 -> vector<2x256xf32>
    %108 = vector.broadcast %6 : f32 to vector<2x256xf32>
    %109 = arith.mulf %107, %108 : vector<2x256xf32>
    %110 = arith.addf %106, %109 : vector<2x256xf32>
    %c223_i32 = arith.constant 223 : i32
    %111 = tpu.dynamic_rotate %84 by %c223_i32 dim 1 : vector<2x256xf32>, i32 -> vector<2x256xf32>
    %112 = vector.broadcast %7 : f32 to vector<2x256xf32>
    %113 = arith.mulf %111, %112 : vector<2x256xf32>
    %114 = arith.addf %110, %113 : vector<2x256xf32>
    %c222_i32 = arith.constant 222 : i32
    %115 = tpu.dynamic_rotate %84 by %c222_i32 dim 1 : vector<2x256xf32>, i32 -> vector<2x256xf32>
    %116 = vector.broadcast %8 : f32 to vector<2x256xf32>
    %117 = arith.mulf %115, %116 : vector<2x256xf32>
    %118 = arith.addf %114, %117 : vector<2x256xf32>
    %119 = vector.broadcast %36 : f32 to vector<2x256xf32>
    %120 = arith.addf %118, %119 : vector<2x256xf32>
    %cst = arith.constant 0.000000e+00 : f32
    %121 = vector.broadcast %cst : f32 to vector<2x256xf32>
    %122 = arith.maximumf %120, %121 : vector<2x256xf32>
    %123 = arith.index_cast %81 : i32 to index
    %c1_141 = arith.constant 1 : index
    %c0_142 = arith.constant 0 : index
    %124 = vector.load %arg1[%123, %c1_141, %c0_142] : memref<2x4x256xf32, #tpu.memory_space<vmem>>, vector<2x1x256xf32>
    %125 = vector.shape_cast %124 : vector<2x1x256xf32> to vector<2x256xf32>
    %126 = vector.broadcast %9 : f32 to vector<2x256xf32>
    %127 = arith.mulf %125, %126 : vector<2x256xf32>
    %c255_i32_143 = arith.constant 255 : i32
    %128 = tpu.dynamic_rotate %125 by %c255_i32_143 dim 1 : vector<2x256xf32>, i32 -> vector<2x256xf32>
    %129 = vector.broadcast %10 : f32 to vector<2x256xf32>
    %130 = arith.mulf %128, %129 : vector<2x256xf32>
    %131 = arith.addf %127, %130 : vector<2x256xf32>
    %c254_i32_144 = arith.constant 254 : i32
    %132 = tpu.dynamic_rotate %125 by %c254_i32_144 dim 1 : vector<2x256xf32>, i32 -> vector<2x256xf32>
    %133 = vector.broadcast %11 : f32 to vector<2x256xf32>
    %134 = arith.mulf %132, %133 : vector<2x256xf32>
    %135 = arith.addf %131, %134 : vector<2x256xf32>
    %c240_i32_145 = arith.constant 240 : i32
    %136 = tpu.dynamic_rotate %125 by %c240_i32_145 dim 1 : vector<2x256xf32>, i32 -> vector<2x256xf32>
    %137 = vector.broadcast %12 : f32 to vector<2x256xf32>
    %138 = arith.mulf %136, %137 : vector<2x256xf32>
    %139 = arith.addf %135, %138 : vector<2x256xf32>
    %c239_i32_146 = arith.constant 239 : i32
    %140 = tpu.dynamic_rotate %125 by %c239_i32_146 dim 1 : vector<2x256xf32>, i32 -> vector<2x256xf32>
    %141 = vector.broadcast %13 : f32 to vector<2x256xf32>
    %142 = arith.mulf %140, %141 : vector<2x256xf32>
    %143 = arith.addf %139, %142 : vector<2x256xf32>
    %c238_i32_147 = arith.constant 238 : i32
    %144 = tpu.dynamic_rotate %125 by %c238_i32_147 dim 1 : vector<2x256xf32>, i32 -> vector<2x256xf32>
    %145 = vector.broadcast %14 : f32 to vector<2x256xf32>
    %146 = arith.mulf %144, %145 : vector<2x256xf32>
    %147 = arith.addf %143, %146 : vector<2x256xf32>
    %c224_i32_148 = arith.constant 224 : i32
    %148 = tpu.dynamic_rotate %125 by %c224_i32_148 dim 1 : vector<2x256xf32>, i32 -> vector<2x256xf32>
    %149 = vector.broadcast %15 : f32 to vector<2x256xf32>
    %150 = arith.mulf %148, %149 : vector<2x256xf32>
    %151 = arith.addf %147, %150 : vector<2x256xf32>
    %c223_i32_149 = arith.constant 223 : i32
    %152 = tpu.dynamic_rotate %125 by %c223_i32_149 dim 1 : vector<2x256xf32>, i32 -> vector<2x256xf32>
    %153 = vector.broadcast %16 : f32 to vector<2x256xf32>
    %154 = arith.mulf %152, %153 : vector<2x256xf32>
    %155 = arith.addf %151, %154 : vector<2x256xf32>
    %c222_i32_150 = arith.constant 222 : i32
    %156 = tpu.dynamic_rotate %125 by %c222_i32_150 dim 1 : vector<2x256xf32>, i32 -> vector<2x256xf32>
    %157 = vector.broadcast %17 : f32 to vector<2x256xf32>
    %158 = arith.mulf %156, %157 : vector<2x256xf32>
    %159 = arith.addf %155, %158 : vector<2x256xf32>
    %160 = vector.broadcast %37 : f32 to vector<2x256xf32>
    %161 = arith.addf %159, %160 : vector<2x256xf32>
    %cst_151 = arith.constant 0.000000e+00 : f32
    %162 = vector.broadcast %cst_151 : f32 to vector<2x256xf32>
    %163 = arith.maximumf %161, %162 : vector<2x256xf32>
    %164 = arith.index_cast %81 : i32 to index
    %c2_152 = arith.constant 2 : index
    %c0_153 = arith.constant 0 : index
    %165 = vector.load %arg1[%164, %c2_152, %c0_153] : memref<2x4x256xf32, #tpu.memory_space<vmem>>, vector<2x1x256xf32>
    %166 = vector.shape_cast %165 : vector<2x1x256xf32> to vector<2x256xf32>
    %167 = vector.broadcast %18 : f32 to vector<2x256xf32>
    %168 = arith.mulf %166, %167 : vector<2x256xf32>
    %c255_i32_154 = arith.constant 255 : i32
    %169 = tpu.dynamic_rotate %166 by %c255_i32_154 dim 1 : vector<2x256xf32>, i32 -> vector<2x256xf32>
    %170 = vector.broadcast %19 : f32 to vector<2x256xf32>
    %171 = arith.mulf %169, %170 : vector<2x256xf32>
    %172 = arith.addf %168, %171 : vector<2x256xf32>
    %c254_i32_155 = arith.constant 254 : i32
    %173 = tpu.dynamic_rotate %166 by %c254_i32_155 dim 1 : vector<2x256xf32>, i32 -> vector<2x256xf32>
    %174 = vector.broadcast %20 : f32 to vector<2x256xf32>
    %175 = arith.mulf %173, %174 : vector<2x256xf32>
    %176 = arith.addf %172, %175 : vector<2x256xf32>
    %c240_i32_156 = arith.constant 240 : i32
    %177 = tpu.dynamic_rotate %166 by %c240_i32_156 dim 1 : vector<2x256xf32>, i32 -> vector<2x256xf32>
    %178 = vector.broadcast %21 : f32 to vector<2x256xf32>
    %179 = arith.mulf %177, %178 : vector<2x256xf32>
    %180 = arith.addf %176, %179 : vector<2x256xf32>
    %c239_i32_157 = arith.constant 239 : i32
    %181 = tpu.dynamic_rotate %166 by %c239_i32_157 dim 1 : vector<2x256xf32>, i32 -> vector<2x256xf32>
    %182 = vector.broadcast %22 : f32 to vector<2x256xf32>
    %183 = arith.mulf %181, %182 : vector<2x256xf32>
    %184 = arith.addf %180, %183 : vector<2x256xf32>
    %c238_i32_158 = arith.constant 238 : i32
    %185 = tpu.dynamic_rotate %166 by %c238_i32_158 dim 1 : vector<2x256xf32>, i32 -> vector<2x256xf32>
    %186 = vector.broadcast %23 : f32 to vector<2x256xf32>
    %187 = arith.mulf %185, %186 : vector<2x256xf32>
    %188 = arith.addf %184, %187 : vector<2x256xf32>
    %c224_i32_159 = arith.constant 224 : i32
    %189 = tpu.dynamic_rotate %166 by %c224_i32_159 dim 1 : vector<2x256xf32>, i32 -> vector<2x256xf32>
    %190 = vector.broadcast %24 : f32 to vector<2x256xf32>
    %191 = arith.mulf %189, %190 : vector<2x256xf32>
    %192 = arith.addf %188, %191 : vector<2x256xf32>
    %c223_i32_160 = arith.constant 223 : i32
    %193 = tpu.dynamic_rotate %166 by %c223_i32_160 dim 1 : vector<2x256xf32>, i32 -> vector<2x256xf32>
    %194 = vector.broadcast %25 : f32 to vector<2x256xf32>
    %195 = arith.mulf %193, %194 : vector<2x256xf32>
    %196 = arith.addf %192, %195 : vector<2x256xf32>
    %c222_i32_161 = arith.constant 222 : i32
    %197 = tpu.dynamic_rotate %166 by %c222_i32_161 dim 1 : vector<2x256xf32>, i32 -> vector<2x256xf32>
    %198 = vector.broadcast %26 : f32 to vector<2x256xf32>
    %199 = arith.mulf %197, %198 : vector<2x256xf32>
    %200 = arith.addf %196, %199 : vector<2x256xf32>
    %201 = vector.broadcast %38 : f32 to vector<2x256xf32>
    %202 = arith.addf %200, %201 : vector<2x256xf32>
    %cst_162 = arith.constant 0.000000e+00 : f32
    %203 = vector.broadcast %cst_162 : f32 to vector<2x256xf32>
    %204 = arith.maximumf %202, %203 : vector<2x256xf32>
    %205 = arith.index_cast %81 : i32 to index
    %c3_163 = arith.constant 3 : index
    %c0_164 = arith.constant 0 : index
    %206 = vector.load %arg1[%205, %c3_163, %c0_164] : memref<2x4x256xf32, #tpu.memory_space<vmem>>, vector<2x1x256xf32>
    %207 = vector.shape_cast %206 : vector<2x1x256xf32> to vector<2x256xf32>
    %208 = vector.broadcast %27 : f32 to vector<2x256xf32>
    %209 = arith.mulf %207, %208 : vector<2x256xf32>
    %c255_i32_165 = arith.constant 255 : i32
    %210 = tpu.dynamic_rotate %207 by %c255_i32_165 dim 1 : vector<2x256xf32>, i32 -> vector<2x256xf32>
    %211 = vector.broadcast %28 : f32 to vector<2x256xf32>
    %212 = arith.mulf %210, %211 : vector<2x256xf32>
    %213 = arith.addf %209, %212 : vector<2x256xf32>
    %c254_i32_166 = arith.constant 254 : i32
    %214 = tpu.dynamic_rotate %207 by %c254_i32_166 dim 1 : vector<2x256xf32>, i32 -> vector<2x256xf32>
    %215 = vector.broadcast %29 : f32 to vector<2x256xf32>
    %216 = arith.mulf %214, %215 : vector<2x256xf32>
    %217 = arith.addf %213, %216 : vector<2x256xf32>
    %c240_i32_167 = arith.constant 240 : i32
    %218 = tpu.dynamic_rotate %207 by %c240_i32_167 dim 1 : vector<2x256xf32>, i32 -> vector<2x256xf32>
    %219 = vector.broadcast %30 : f32 to vector<2x256xf32>
    %220 = arith.mulf %218, %219 : vector<2x256xf32>
    %221 = arith.addf %217, %220 : vector<2x256xf32>
    %c239_i32_168 = arith.constant 239 : i32
    %222 = tpu.dynamic_rotate %207 by %c239_i32_168 dim 1 : vector<2x256xf32>, i32 -> vector<2x256xf32>
    %223 = vector.broadcast %31 : f32 to vector<2x256xf32>
    %224 = arith.mulf %222, %223 : vector<2x256xf32>
    %225 = arith.addf %221, %224 : vector<2x256xf32>
    %c238_i32_169 = arith.constant 238 : i32
    %226 = tpu.dynamic_rotate %207 by %c238_i32_169 dim 1 : vector<2x256xf32>, i32 -> vector<2x256xf32>
    %227 = vector.broadcast %32 : f32 to vector<2x256xf32>
    %228 = arith.mulf %226, %227 : vector<2x256xf32>
    %229 = arith.addf %225, %228 : vector<2x256xf32>
    %c224_i32_170 = arith.constant 224 : i32
    %230 = tpu.dynamic_rotate %207 by %c224_i32_170 dim 1 : vector<2x256xf32>, i32 -> vector<2x256xf32>
    %231 = vector.broadcast %33 : f32 to vector<2x256xf32>
    %232 = arith.mulf %230, %231 : vector<2x256xf32>
    %233 = arith.addf %229, %232 : vector<2x256xf32>
    %c223_i32_171 = arith.constant 223 : i32
    %234 = tpu.dynamic_rotate %207 by %c223_i32_171 dim 1 : vector<2x256xf32>, i32 -> vector<2x256xf32>
    %235 = vector.broadcast %34 : f32 to vector<2x256xf32>
    %236 = arith.mulf %234, %235 : vector<2x256xf32>
    %237 = arith.addf %233, %236 : vector<2x256xf32>
    %c222_i32_172 = arith.constant 222 : i32
    %238 = tpu.dynamic_rotate %207 by %c222_i32_172 dim 1 : vector<2x256xf32>, i32 -> vector<2x256xf32>
    %239 = vector.broadcast %35 : f32 to vector<2x256xf32>
    %240 = arith.mulf %238, %239 : vector<2x256xf32>
    %241 = arith.addf %237, %240 : vector<2x256xf32>
    %242 = vector.broadcast %39 : f32 to vector<2x256xf32>
    %243 = arith.addf %241, %242 : vector<2x256xf32>
    %cst_173 = arith.constant 0.000000e+00 : f32
    %244 = vector.broadcast %cst_173 : f32 to vector<2x256xf32>
    %245 = arith.maximumf %243, %244 : vector<2x256xf32>
    %246 = vector.broadcast %40 : f32 to vector<2x256xf32>
    %247 = arith.mulf %122, %246 : vector<2x256xf32>
    %248 = vector.broadcast %41 : f32 to vector<2x256xf32>
    %249 = arith.mulf %163, %248 : vector<2x256xf32>
    %250 = arith.addf %247, %249 : vector<2x256xf32>
    %251 = vector.broadcast %42 : f32 to vector<2x256xf32>
    %252 = arith.mulf %204, %251 : vector<2x256xf32>
    %253 = arith.addf %250, %252 : vector<2x256xf32>
    %254 = vector.broadcast %43 : f32 to vector<2x256xf32>
    %255 = arith.mulf %245, %254 : vector<2x256xf32>
    %256 = arith.addf %253, %255 : vector<2x256xf32>
    %257 = vector.broadcast %72 : f32 to vector<2x256xf32>
    %258 = arith.addf %256, %257 : vector<2x256xf32>
    %cst_174 = arith.constant 0.000000e+00 : f32
    %259 = vector.broadcast %cst_174 : f32 to vector<2x256xf32>
    %260 = arith.maximumf %258, %259 : vector<2x256xf32>
    %261 = arith.index_cast %81 : i32 to index
    %c0_175 = arith.constant 0 : index
    %c0_176 = arith.constant 0 : index
    %262 = vector.load %arg6[%261, %c0_175, %c0_176] : memref<2x8x256xf32, #tpu.memory_space<vmem>>, vector<2x1x256xf32>
    %263 = vector.shape_cast %262 : vector<2x1x256xf32> to vector<2x256xf32>
    %264 = vector.shape_cast %260 : vector<2x256xf32> to vector<2x1x256xf32>
    tpu.vector_store %arg6[%261, %c0_175, %c0_176], %264 {strides = array<i32>} : memref<2x8x256xf32, #tpu.memory_space<vmem>>, vector<2x1x256xf32>,
    %265 = vector.broadcast %44 : f32 to vector<2x256xf32>
    %266 = arith.mulf %122, %265 : vector<2x256xf32>
    %267 = vector.broadcast %45 : f32 to vector<2x256xf32>
    %268 = arith.mulf %163, %267 : vector<2x256xf32>
    %269 = arith.addf %266, %268 : vector<2x256xf32>
    %270 = vector.broadcast %46 : f32 to vector<2x256xf32>
    %271 = arith.mulf %204, %270 : vector<2x256xf32>
    %272 = arith.addf %269, %271 : vector<2x256xf32>
    %273 = vector.broadcast %47 : f32 to vector<2x256xf32>
    %274 = arith.mulf %245, %273 : vector<2x256xf32>
    %275 = arith.addf %272, %274 : vector<2x256xf32>
    %276 = vector.broadcast %73 : f32 to vector<2x256xf32>
    %277 = arith.addf %275, %276 : vector<2x256xf32>
    %cst_177 = arith.constant 0.000000e+00 : f32
    %278 = vector.broadcast %cst_177 : f32 to vector<2x256xf32>
    %279 = arith.maximumf %277, %278 : vector<2x256xf32>
    %280 = arith.index_cast %81 : i32 to index
    %c1_178 = arith.constant 1 : index
    %c0_179 = arith.constant 0 : index
    %281 = vector.load %arg6[%280, %c1_178, %c0_179] : memref<2x8x256xf32, #tpu.memory_space<vmem>>, vector<2x1x256xf32>
    %282 = vector.shape_cast %281 : vector<2x1x256xf32> to vector<2x256xf32>
    %283 = vector.shape_cast %279 : vector<2x256xf32> to vector<2x1x256xf32>
    tpu.vector_store %arg6[%280, %c1_178, %c0_179], %283 {strides = array<i32>} : memref<2x8x256xf32, #tpu.memory_space<vmem>>, vector<2x1x256xf32>,
    %284 = vector.broadcast %48 : f32 to vector<2x256xf32>
    %285 = arith.mulf %122, %284 : vector<2x256xf32>
    %286 = vector.broadcast %49 : f32 to vector<2x256xf32>
    %287 = arith.mulf %163, %286 : vector<2x256xf32>
    %288 = arith.addf %285, %287 : vector<2x256xf32>
    %289 = vector.broadcast %50 : f32 to vector<2x256xf32>
    %290 = arith.mulf %204, %289 : vector<2x256xf32>
    %291 = arith.addf %288, %290 : vector<2x256xf32>
    %292 = vector.broadcast %51 : f32 to vector<2x256xf32>
    %293 = arith.mulf %245, %292 : vector<2x256xf32>
    %294 = arith.addf %291, %293 : vector<2x256xf32>
    %295 = vector.broadcast %74 : f32 to vector<2x256xf32>
    %296 = arith.addf %294, %295 : vector<2x256xf32>
    %cst_180 = arith.constant 0.000000e+00 : f32
    %297 = vector.broadcast %cst_180 : f32 to vector<2x256xf32>
    %298 = arith.maximumf %296, %297 : vector<2x256xf32>
    %299 = arith.index_cast %81 : i32 to index
    %c2_181 = arith.constant 2 : index
    %c0_182 = arith.constant 0 : index
    %300 = vector.load %arg6[%299, %c2_181, %c0_182] : memref<2x8x256xf32, #tpu.memory_space<vmem>>, vector<2x1x256xf32>
    %301 = vector.shape_cast %300 : vector<2x1x256xf32> to vector<2x256xf32>
    %302 = vector.shape_cast %298 : vector<2x256xf32> to vector<2x1x256xf32>
    tpu.vector_store %arg6[%299, %c2_181, %c0_182], %302 {strides = array<i32>} : memref<2x8x256xf32, #tpu.memory_space<vmem>>, vector<2x1x256xf32>,
    %303 = vector.broadcast %52 : f32 to vector<2x256xf32>
    %304 = arith.mulf %122, %303 : vector<2x256xf32>
    %305 = vector.broadcast %53 : f32 to vector<2x256xf32>
    %306 = arith.mulf %163, %305 : vector<2x256xf32>
    %307 = arith.addf %304, %306 : vector<2x256xf32>
    %308 = vector.broadcast %54 : f32 to vector<2x256xf32>
    %309 = arith.mulf %204, %308 : vector<2x256xf32>
    %310 = arith.addf %307, %309 : vector<2x256xf32>
    %311 = vector.broadcast %55 : f32 to vector<2x256xf32>
    %312 = arith.mulf %245, %311 : vector<2x256xf32>
    %313 = arith.addf %310, %312 : vector<2x256xf32>
    %314 = vector.broadcast %75 : f32 to vector<2x256xf32>
    %315 = arith.addf %313, %314 : vector<2x256xf32>
    %cst_183 = arith.constant 0.000000e+00 : f32
    %316 = vector.broadcast %cst_183 : f32 to vector<2x256xf32>
    %317 = arith.maximumf %315, %316 : vector<2x256xf32>
    %318 = arith.index_cast %81 : i32 to index
    %c3_184 = arith.constant 3 : index
    %c0_185 = arith.constant 0 : index
    %319 = vector.load %arg6[%318, %c3_184, %c0_185] : memref<2x8x256xf32, #tpu.memory_space<vmem>>, vector<2x1x256xf32>
    %320 = vector.shape_cast %319 : vector<2x1x256xf32> to vector<2x256xf32>
    %321 = vector.shape_cast %317 : vector<2x256xf32> to vector<2x1x256xf32>
    tpu.vector_store %arg6[%318, %c3_184, %c0_185], %321 {strides = array<i32>} : memref<2x8x256xf32, #tpu.memory_space<vmem>>, vector<2x1x256xf32>,
    %322 = vector.broadcast %56 : f32 to vector<2x256xf32>
    %323 = arith.mulf %122, %322 : vector<2x256xf32>
    %324 = vector.broadcast %57 : f32 to vector<2x256xf32>
    %325 = arith.mulf %163, %324 : vector<2x256xf32>
    %326 = arith.addf %323, %325 : vector<2x256xf32>
    %327 = vector.broadcast %58 : f32 to vector<2x256xf32>
    %328 = arith.mulf %204, %327 : vector<2x256xf32>
    %329 = arith.addf %326, %328 : vector<2x256xf32>
    %330 = vector.broadcast %59 : f32 to vector<2x256xf32>
    %331 = arith.mulf %245, %330 : vector<2x256xf32>
    %332 = arith.addf %329, %331 : vector<2x256xf32>
    %333 = vector.broadcast %76 : f32 to vector<2x256xf32>
    %334 = arith.addf %332, %333 : vector<2x256xf32>
    %cst_186 = arith.constant 0.000000e+00 : f32
    %335 = vector.broadcast %cst_186 : f32 to vector<2x256xf32>
    %336 = arith.maximumf %334, %335 : vector<2x256xf32>
    %337 = arith.index_cast %81 : i32 to index
    %c4_187 = arith.constant 4 : index
    %c0_188 = arith.constant 0 : index
    %338 = vector.load %arg6[%337, %c4_187, %c0_188] : memref<2x8x256xf32, #tpu.memory_space<vmem>>, vector<2x1x256xf32>
    %339 = vector.shape_cast %338 : vector<2x1x256xf32> to vector<2x256xf32>
    %340 = vector.shape_cast %336 : vector<2x256xf32> to vector<2x1x256xf32>
    tpu.vector_store %arg6[%337, %c4_187, %c0_188], %340 {strides = array<i32>} : memref<2x8x256xf32, #tpu.memory_space<vmem>>, vector<2x1x256xf32>,
    %341 = vector.broadcast %60 : f32 to vector<2x256xf32>
    %342 = arith.mulf %122, %341 : vector<2x256xf32>
    %343 = vector.broadcast %61 : f32 to vector<2x256xf32>
    %344 = arith.mulf %163, %343 : vector<2x256xf32>
    %345 = arith.addf %342, %344 : vector<2x256xf32>
    %346 = vector.broadcast %62 : f32 to vector<2x256xf32>
    %347 = arith.mulf %204, %346 : vector<2x256xf32>
    %348 = arith.addf %345, %347 : vector<2x256xf32>
    %349 = vector.broadcast %63 : f32 to vector<2x256xf32>
    %350 = arith.mulf %245, %349 : vector<2x256xf32>
    %351 = arith.addf %348, %350 : vector<2x256xf32>
    %352 = vector.broadcast %77 : f32 to vector<2x256xf32>
    %353 = arith.addf %351, %352 : vector<2x256xf32>
    %cst_189 = arith.constant 0.000000e+00 : f32
    %354 = vector.broadcast %cst_189 : f32 to vector<2x256xf32>
    %355 = arith.maximumf %353, %354 : vector<2x256xf32>
    %356 = arith.index_cast %81 : i32 to index
    %c5_190 = arith.constant 5 : index
    %c0_191 = arith.constant 0 : index
    %357 = vector.load %arg6[%356, %c5_190, %c0_191] : memref<2x8x256xf32, #tpu.memory_space<vmem>>, vector<2x1x256xf32>
    %358 = vector.shape_cast %357 : vector<2x1x256xf32> to vector<2x256xf32>
    %359 = vector.shape_cast %355 : vector<2x256xf32> to vector<2x1x256xf32>
    tpu.vector_store %arg6[%356, %c5_190, %c0_191], %359 {strides = array<i32>} : memref<2x8x256xf32, #tpu.memory_space<vmem>>, vector<2x1x256xf32>,
    %360 = vector.broadcast %64 : f32 to vector<2x256xf32>
    %361 = arith.mulf %122, %360 : vector<2x256xf32>
    %362 = vector.broadcast %65 : f32 to vector<2x256xf32>
    %363 = arith.mulf %163, %362 : vector<2x256xf32>
    %364 = arith.addf %361, %363 : vector<2x256xf32>
    %365 = vector.broadcast %66 : f32 to vector<2x256xf32>
    %366 = arith.mulf %204, %365 : vector<2x256xf32>
    %367 = arith.addf %364, %366 : vector<2x256xf32>
    %368 = vector.broadcast %67 : f32 to vector<2x256xf32>
    %369 = arith.mulf %245, %368 : vector<2x256xf32>
    %370 = arith.addf %367, %369 : vector<2x256xf32>
    %371 = vector.broadcast %78 : f32 to vector<2x256xf32>
    %372 = arith.addf %370, %371 : vector<2x256xf32>
    %cst_192 = arith.constant 0.000000e+00 : f32
    %373 = vector.broadcast %cst_192 : f32 to vector<2x256xf32>
    %374 = arith.maximumf %372, %373 : vector<2x256xf32>
    %375 = arith.index_cast %81 : i32 to index
    %c6_193 = arith.constant 6 : index
    %c0_194 = arith.constant 0 : index
    %376 = vector.load %arg6[%375, %c6_193, %c0_194] : memref<2x8x256xf32, #tpu.memory_space<vmem>>, vector<2x1x256xf32>
    %377 = vector.shape_cast %376 : vector<2x1x256xf32> to vector<2x256xf32>
    %378 = vector.shape_cast %374 : vector<2x256xf32> to vector<2x1x256xf32>
    tpu.vector_store %arg6[%375, %c6_193, %c0_194], %378 {strides = array<i32>} : memref<2x8x256xf32, #tpu.memory_space<vmem>>, vector<2x1x256xf32>,
    %379 = vector.broadcast %68 : f32 to vector<2x256xf32>
    %380 = arith.mulf %122, %379 : vector<2x256xf32>
    %381 = vector.broadcast %69 : f32 to vector<2x256xf32>
    %382 = arith.mulf %163, %381 : vector<2x256xf32>
    %383 = arith.addf %380, %382 : vector<2x256xf32>
    %384 = vector.broadcast %70 : f32 to vector<2x256xf32>
    %385 = arith.mulf %204, %384 : vector<2x256xf32>
    %386 = arith.addf %383, %385 : vector<2x256xf32>
    %387 = vector.broadcast %71 : f32 to vector<2x256xf32>
    %388 = arith.mulf %245, %387 : vector<2x256xf32>
    %389 = arith.addf %386, %388 : vector<2x256xf32>
    %390 = vector.broadcast %79 : f32 to vector<2x256xf32>
    %391 = arith.addf %389, %390 : vector<2x256xf32>
    %cst_195 = arith.constant 0.000000e+00 : f32
    %392 = vector.broadcast %cst_195 : f32 to vector<2x256xf32>
    %393 = arith.maximumf %391, %392 : vector<2x256xf32>
    %394 = arith.index_cast %81 : i32 to index
    %c7_196 = arith.constant 7 : index
    %c0_197 = arith.constant 0 : index
    %395 = vector.load %arg6[%394, %c7_196, %c0_197] : memref<2x8x256xf32, #tpu.memory_space<vmem>>, vector<2x1x256xf32>
    %396 = vector.shape_cast %395 : vector<2x1x256xf32> to vector<2x256xf32>
    %397 = vector.shape_cast %393 : vector<2x256xf32> to vector<2x1x256xf32>
    tpu.vector_store %arg6[%394, %c7_196, %c0_197], %397 {strides = array<i32>} : memref<2x8x256xf32, #tpu.memory_space<vmem>>, vector<2x1x256xf32>,
    %c1_i32 = arith.constant 1 : i32
    return
  }
  func.func @transform_0(%arg0: i32) -> (i32, i32, i32) {
    %c0_i32 = arith.constant 0 : i32
    %c0_i32_0 = arith.constant 0 : i32
    %c0_i32_1 = arith.constant 0 : i32
    return %arg0, %c0_i32, %c0_i32_0 : i32, i32, i32
  }
  func.func @transform_1(%arg0: i32) -> (i32, i32) {
    %c0_i32 = arith.constant 0 : i32
    %c0_i32_0 = arith.constant 0 : i32
    %c0_i32_1 = arith.constant 0 : i32
    return %c0_i32, %c0_i32_0 : i32, i32
  }
  func.func @transform_2(%arg0: i32) -> i32 {
    %c0_i32 = arith.constant 0 : i32
    %c0_i32_0 = arith.constant 0 : i32
    return %c0_i32 : i32
  }
  func.func @transform_3(%arg0: i32) -> (i32, i32) {
    %c0_i32 = arith.constant 0 : i32
    %c0_i32_0 = arith.constant 0 : i32
    %c0_i32_1 = arith.constant 0 : i32
    return %c0_i32, %c0_i32_0 : i32, i32
  }
  func.func @transform_4(%arg0: i32) -> i32 {
    %c0_i32 = arith.constant 0 : i32
    %c0_i32_0 = arith.constant 0 : i32
    return %c0_i32 : i32
  }
  func.func @transform_5(%arg0: i32) -> (i32, i32, i32) {
    %c0_i32 = arith.constant 0 : i32
    %c0_i32_0 = arith.constant 0 : i32
    %c0_i32_1 = arith.constant 0 : i32
    return %arg0, %c0_i32, %c0_i32_0 : i32, i32, i32
  }
}

</mosaic_0001>

<llo_original>
// kernel: tpu_custom_call.1
$region0: #{tpu_custom_call.1}
  #allocation0 [shape = 'u32[]', space=smem, size = 0x4, offset = 0x4, fixed_abs, tag = 'smem constant byte address 0x4 - core index']
  #allocation1 [shape = 'u32[144,128]{1,0:T(1,128)}', space=vmem, size = 0x12000, scoped, tag = 'internal scratch']
  %s0 = inlined_call_operand.hbm [shape: f32[2,4,256], index: 0, kind: input, shape index: {}]
  %s1 = inlined_call_operand.vmem [shape: f32[4,9], index: 1, kind: input, shape index: {}]
  %s2 = inlined_call_operand.vmem [shape: f32[4], index: 2, kind: input, shape index: {}]
  %s3 = inlined_call_operand.vmem [shape: f32[8,4], index: 3, kind: input, shape index: {}]
  %s4 = inlined_call_operand.vmem [shape: f32[8], index: 4, kind: input, shape index: {}]
  %s5 = inlined_call_operand.hbm [shape: f32[2,8,256], index: 5, kind: output, shape index: {}]
  %s6 = sld [smem:[#allocation0]]
  $region50: #{tpu_custom_call.1} parent=0
    _
  %s8 = ssub.s32 1, %s6
  %s9 = scalar_select 0, %s8, %s6
  $region1: #{tpu_custom_call.1} parent=0
    #allocation2 [shape = 'u8[8192]{0}', space=vmem, size = 0x2000, scoped, tag = 'input window, operand 0, single buffered']
    #allocation3 [shape = 's32[1]{0}', space=sflag, size = 0x4, scoped, tag = 'scoped memory for tpu_custom_call.1']
    #allocation4 [shape = 's32[1]{0}', space=sflag, size = 0x4, scoped, tag = 'scoped memory for tpu_custom_call.1']
    #allocation5 [shape = 's32[1]{0}', space=sflag, size = 0x4, scoped, tag = 'scoped memory for tpu_custom_call.1']
    #allocation6 [shape = 'u8[2048]{0}', space=smem, size = 0x800, scoped, tag = 'input window, operand 1, single buffered']
    #allocation7 [shape = 'u8[512]{0}', space=smem, size = 0x200, scoped, tag = 'input window, operand 2, single buffered']
    #allocation8 [shape = 's32[1]{0}', space=sflag, size = 0x4, scoped, tag = 'scoped memory for tpu_custom_call.1']
    #allocation9 [shape = 'u8[4096]{0}', space=smem, size = 0x1000, scoped, tag = 'input window, operand 3, single buffered']
    #allocation10 [shape = 'u8[512]{0}', space=smem, size = 0x200, scoped, tag = 'input window, operand 4, single buffered']
    #allocation11 [shape = 's32[1]{0}', space=sflag, size = 0x4, scoped, tag = 'scoped memory for tpu_custom_call.1']
    #allocation12 [shape = 'u8[16384]{0}', space=vmem, size = 0x4000, scoped, tag = 'output window, operand 0, single buffered']
    %10 = vsyncpa [#allocation3], 0
    %11 = vsyncpa [#allocation5], 0
    %12 = vsyncpa [#allocation8], 0
    %13 = vsyncpa [#allocation11], 0
    %14 = vsyncpa [#allocation4], 0
    // Predicated region
    $region2: #{tpu_custom_call.1} parent=1 // pred_check
      _
    $region3: #{tpu_custom_call.1} parent=1 // pred_check_branch
      %16 = sbr.rel (0) target = $region5
    $region4: #{tpu_custom_call.1} parent=1 // pred_region
      %s18 = ssub.s32 256, 256
      %19 = vsyncadd [#allocation3], %s18
      %s20 = sshll.u32 [#allocation2], 4
      %s21 = int_to_ptr.vmem [resolvable:$true] %s20
      %26 = dma.hbm_to_vmem [thread:$0]  %s0, 256, %s21, [#allocation3], 128, 128, 8
    $region5: #{tpu_custom_call.1} parent=1 // pred_fallthru
      _
    // Predicated region
    $region6: #{tpu_custom_call.1} parent=1 // pred_check
      _
    $region7: #{tpu_custom_call.1} parent=1 // pred_check_branch
      %28 = sbr.rel (0) target = $region9
    $region8: #{tpu_custom_call.1} parent=1 // pred_region
      %s30 = ssub.s32 64, 64
      %31 = vsyncadd [#allocation5], %s30
      %s33 = sshll.u32 %s1, 4
      %s34 = int_to_ptr.vmem [resolvable:$true] %s33
      %36 = dma.vmem_to_smem %s34, 64, [#allocation6], [#allocation5]
    $region9: #{tpu_custom_call.1} parent=1 // pred_fallthru
      _
    // Predicated region
    $region10: #{tpu_custom_call.1} parent=1 // pred_check
      _
    $region11: #{tpu_custom_call.1} parent=1 // pred_check_branch
      %38 = sbr.rel (0) target = $region13
    $region12: #{tpu_custom_call.1} parent=1 // pred_region
      %s40 = ssub.s32 16, 16
      %41 = vsyncadd [#allocation8], %s40
      %s43 = sshll.u32 %s2, 4
      %s44 = int_to_ptr.vmem [resolvable:$true] %s43
      %46 = dma.vmem_to_smem %s44, 16, [#allocation7], [#allocation8]
    $region13: #{tpu_custom_call.1} parent=1 // pred_fallthru
      _
    // Predicated region
    $region14: #{tpu_custom_call.1} parent=1 // pred_check
      _
    $region15: #{tpu_custom_call.1} parent=1 // pred_check_branch
      %48 = sbr.rel (0) target = $region17
    $region16: #{tpu_custom_call.1} parent=1 // pred_region
      %s50 = ssub.s32 128, 128
      %51 = vsyncadd [#allocation8], %s50
      %s53 = sshll.u32 %s3, 4
      %s54 = int_to_ptr.vmem [resolvable:$true] %s53
      %56 = dma.vmem_to_smem %s54, 128, [#allocation9], [#allocation8]
    $region17: #{tpu_custom_call.1} parent=1 // pred_fallthru
      _
    // Predicated region
    $region18: #{tpu_custom_call.1} parent=1 // pred_check
      _
    $region19: #{tpu_custom_call.1} parent=1 // pred_check_branch
      %58 = sbr.rel (0) target = $region21
    $region20: #{tpu_custom_call.1} parent=1 // pred_region
      %s60 = ssub.s32 16, 16
      %61 = vsyncadd [#allocation11], %s60
      %s63 = sshll.u32 %s4, 4
      %s64 = int_to_ptr.vmem [resolvable:$true] %s63
      %66 = dma.vmem_to_smem %s64, 16, [#allocation10], [#allocation11]
    $region21: #{tpu_custom_call.1} parent=1 // pred_fallthru
      _
    // Predicated region
    $region22: #{tpu_custom_call.1} parent=1 // pred_check
      _
    $region23: #{tpu_custom_call.1} parent=1 // pred_check_branch
      %68 = sbr.rel (0) target = $region25
    $region24: #{tpu_custom_call.1} parent=1 // pred_region
      %69 = dma.done [#allocation3], 256
    $region25: #{tpu_custom_call.1} parent=1 // pred_fallthru
      _
    // Predicated region
    $region26: #{tpu_custom_call.1} parent=1 // pred_check
      _
    $region27: #{tpu_custom_call.1} parent=1 // pred_check_branch
      %71 = sbr.rel (0) target = $region29
    $region28: #{tpu_custom_call.1} parent=1 // pred_region
      %72 = dma.done [#allocation5], 64
    $region29: #{tpu_custom_call.1} parent=1 // pred_fallthru
      _
    // Predicated region
    $region30: #{tpu_custom_call.1} parent=1 // pred_check
      _
    $region31: #{tpu_custom_call.1} parent=1 // pred_check_branch
      %74 = sbr.rel (0) target = $region33
    $region32: #{tpu_custom_call.1} parent=1 // pred_region
      %75 = dma.done [#allocation8], 16
    $region33: #{tpu_custom_call.1} parent=1 // pred_fallthru
      _
    // Predicated region
    $region34: #{tpu_custom_call.1} parent=1 // pred_check
      _
    $region35: #{tpu_custom_call.1} parent=1 // pred_check_branch
      %77 = sbr.rel (0) target = $region37
    $region36: #{tpu_custom_call.1} parent=1 // pred_region
      %78 = dma.done [#allocation8], 128
    $region37: #{tpu_custom_call.1} parent=1 // pred_fallthru
      _
    // Predicated region
    $region38: #{tpu_custom_call.1} parent=1 // pred_check
      _
    $region39: #{tpu_custom_call.1} parent=1 // pred_check_branch
      %80 = sbr.rel (0) target = $region41
    $region40: #{tpu_custom_call.1} parent=1 // pred_region
      %81 = dma.done [#allocation11], 16
    $region41: #{tpu_custom_call.1} parent=1 // pred_fallthru
      _
    %82 = sfence
    %s83 = sld [smem:[#allocation6]]
    %s84 = sld [smem:[#allocation6 + $0x1]]
    %s85 = sld [smem:[#allocation6 + $0x2]]
    %s86 = sld [smem:[#allocation6 + $0x3]]
    %s87 = sld [smem:[#allocation6 + $0x4]]
    %s88 = sld [smem:[#allocation6 + $0x5]]
    %s89 = sld [smem:[#allocation6 + $0x6]]
    %s90 = sld [smem:[#allocation6 + $0x7]]
    %s91 = sld [smem:[#allocation6 + $0x8]]
    %s92 = sld [smem:[#allocation6 + $0x80]]
    %s93 = sld [smem:[#allocation6 + $0x81]]
    %s94 = sld [smem:[#allocation6 + $0x82]]
    %s95 = sld [smem:[#allocation6 + $0x83]]
    %s96 = sld [smem:[#allocation6 + $0x84]]
    %s97 = sld [smem:[#allocation6 + $0x85]]
    %s98 = sld [smem:[#allocation6 + $0x86]]
    %s99 = sld [smem:[#allocation6 + $0x87]]
    %s100 = sld [smem:[#allocation6 + $0x88]]
    %s101 = sld [smem:[#allocation6 + $0x100]]
    %s102 = sld [smem:[#allocation6 + $0x101]]
    %s103 = sld [smem:[#allocation6 + $0x102]]
    %s104 = sld [smem:[#allocation6 + $0x103]]
    %s105 = sld [smem:[#allocation6 + $0x104]]
    %s106 = sld [smem:[#allocation6 + $0x105]]
    %s107 = sld [smem:[#allocation6 + $0x106]]
    %s108 = sld [smem:[#allocation6 + $0x107]]
    %s109 = sld [smem:[#allocation6 + $0x108]]
    %s110 = sld [smem:[#allocation6 + $0x180]]
    %s111 = sld [smem:[#allocation6 + $0x181]]
    %s112 = sld [smem:[#allocation6 + $0x182]]
    %s113 = sld [smem:[#allocation6 + $0x183]]
    %s114 = sld [smem:[#allocation6 + $0x184]]
    %s115 = sld [smem:[#allocation6 + $0x185]]
    %s116 = sld [smem:[#allocation6 + $0x186]]
    %s117 = sld [smem:[#allocation6 + $0x187]]
    %s118 = sld [smem:[#allocation6 + $0x188]]
    %s119 = sld [smem:[#allocation7]]
    %s120 = sld [smem:[#allocation7 + $0x1]]
    %s121 = sld [smem:[#allocation7 + $0x2]]
    %s122 = sld [smem:[#allocation7 + $0x3]]
    %s123 = sld [smem:[#allocation9]]
    %s124 = sld [smem:[#allocation9 + $0x1]]
    %s125 = sld [smem:[#allocation9 + $0x2]]
    %s126 = sld [smem:[#allocation9 + $0x3]]
    %s127 = sld [smem:[#allocation9 + $0x80]]
    %s128 = sld [smem:[#allocation9 + $0x81]]
    %s129 = sld [smem:[#allocation9 + $0x82]]
    %s130 = sld [smem:[#allocation9 + $0x83]]
    %s131 = sld [smem:[#allocation9 + $0x100]]
    %s132 = sld [smem:[#allocation9 + $0x101]]
    %s133 = sld [smem:[#allocation9 + $0x102]]
    %s134 = sld [smem:[#allocation9 + $0x103]]
    %s135 = sld [smem:[#allocation9 + $0x180]]
    %s136 = sld [smem:[#allocation9 + $0x181]]
    %s137 = sld [smem:[#allocation9 + $0x182]]
    %s138 = sld [smem:[#allocation9 + $0x183]]
    %s139 = sld [smem:[#allocation9 + $0x200]]
    %s140 = sld [smem:[#allocation9 + $0x201]]
    %s141 = sld [smem:[#allocation9 + $0x202]]
    %s142 = sld [smem:[#allocation9 + $0x203]]
    %s143 = sld [smem:[#allocation9 + $0x280]]
    %s144 = sld [smem:[#allocation9 + $0x281]]
    %s145 = sld [smem:[#allocation9 + $0x282]]
    %s146 = sld [smem:[#allocation9 + $0x283]]
    %s147 = sld [smem:[#allocation9 + $0x300]]
    %s148 = sld [smem:[#allocation9 + $0x301]]
    %s149 = sld [smem:[#allocation9 + $0x302]]
    %s150 = sld [smem:[#allocation9 + $0x303]]
    %s151 = sld [smem:[#allocation9 + $0x380]]
    %s152 = sld [smem:[#allocation9 + $0x381]]
    %s153 = sld [smem:[#allocation9 + $0x382]]
    %s154 = sld [smem:[#allocation9 + $0x383]]
    %s155 = sld [smem:[#allocation10]]
    %s156 = sld [smem:[#allocation10 + $0x1]]
    %s157 = sld [smem:[#allocation10 + $0x2]]
    %s158 = sld [smem:[#allocation10 + $0x3]]
    %s159 = sld [smem:[#allocation10 + $0x4]]
    %s160 = sld [smem:[#allocation10 + $0x5]]
    %s161 = sld [smem:[#allocation10 + $0x6]]
    %s162 = sld [smem:[#allocation10 + $0x7]]
    %s163 = smul.u32 0, 2
    %s164 = smul.addr %s163, 4
    %s165 = scalar_lea.vmem [#allocation2], %s164
    %v166 = vld [vmem:[%s165] ss:$4 sm:$0x3]
    %s167 = scalar_lea.vmem %s165, 8 [#allocation2]
    %v168 = vld [vmem:[%s167] ss:$4 sm:$0x3]
    %v169 = vstv %s83
    %v170 = vmul.f32 %v166, %v169
    %v171 = vmul.f32 %v168, %v169
    %v174 = vcombine.low %v166, %v168
    %v176 = vunpack.c.l.s4 1966171168
    %v177 = vunpack.c.0.s8 %v176
    %v178 = vlaneseq
    %v179 = vshrl.u32 %v178, 7
    %v180 = vsub.s32 %v177, %v179
    %v181 = vrot.slane %v174, %v180
    %v182 = vcombine.high %v181, %v181
    %v184 = vunpack.c.l.s4 1966171168
    %v185 = vunpack.c.0.s8 %v184
    %v186 = vlaneseq
    %v187 = vshrl.u32 %v186, 7
    %v188 = vsub.s32 %v185, %v187
    %v189 = vrot.slane %v181, %v188
    %v191 = vunpack.c.l.s4 1966171168
    %v192 = vunpack.c.0.s8 %v191
    %v193 = vlaneseq
    %v194 = vshrl.u32 %v193, 7
    %v195 = vsub.s32 %v192, %v194
    %v196 = vrot.slane %v182, %v195
    %199 = vrot.lane.b32.xlu0 %v189, 127
    %v200 = vpop.permute.xlu0 %199
    %201 = vrot.lane.b32.xlu0 %v196, 127
    %v202 = vpop.permute.xlu0 %201
    %v203 = vlaneseq
    %v204 = vand.u32 %v203, 127
    %vm205 = vcmp.lt.s32.totalorder %v204, 127
    %v206 = vsel %vm205, %v200, %v202
    %v207 = vsel %vm205, %v202, %v200
    %v208 = vstv %s84
    %v209 = vmul.f32 %v206, %v208
    %v210 = vmul.f32 %v207, %v208
    %v213 = vcombine.low %v209, %v210
    %v215 = vunpack.c.l.s4 1966171168
    %v216 = vunpack.c.0.s8 %v215
    %v217 = vlaneseq
    %v218 = vshrl.u32 %v217, 7
    %v219 = vsub.s32 %v216, %v218
    %v220 = vrot.slane %v213, %v219
    %v221 = vcombine.high %v220, %v220
    %v223 = vunpack.c.l.s4 1966171168
    %v224 = vunpack.c.0.s8 %v223
    %v225 = vlaneseq
    %v226 = vshrl.u32 %v225, 7
    %v227 = vsub.s32 %v224, %v226
    %v228 = vrot.slane %v220, %v227
    %v230 = vunpack.c.l.s4 1966171168
    %v231 = vunpack.c.0.s8 %v230
    %v232 = vlaneseq
    %v233 = vshrl.u32 %v232, 7
    %v234 = vsub.s32 %v231, %v233
    %v235 = vrot.slane %v221, %v234
    %v238 = vadd.f32 %v170, %v228
    %v239 = vadd.f32 %v171, %v235
    %240 = vrot.lane.b32.xlu0 %v189, 126
    %v241 = vpop.permute.xlu0 %240
    %242 = vrot.lane.b32.xlu0 %v196, 126
    %v243 = vpop.permute.xlu0 %242
    %vm244 = vcmp.lt.s32.totalorder %v204, 126
    %v245 = vsel %vm244, %v241, %v243
    %v246 = vsel %vm244, %v243, %v241
    %v247 = vstv %s85
    %v248 = vmul.f32 %v245, %v247
    %v249 = vmul.f32 %v246, %v247
    %v252 = vcombine.low %v248, %v249
    %v254 = vunpack.c.l.s4 1966171168
    %v255 = vunpack.c.0.s8 %v254
    %v256 = vlaneseq
    %v257 = vshrl.u32 %v256, 7
    %v258 = vsub.s32 %v255, %v257
    %v259 = vrot.slane %v252, %v258
    %v260 = vcombine.high %v259, %v259
    %v262 = vunpack.c.l.s4 1966171168
    %v263 = vunpack.c.0.s8 %v262
    %v264 = vlaneseq
    %v265 = vshrl.u32 %v264, 7
    %v266 = vsub.s32 %v263, %v265
    %v267 = vrot.slane %v259, %v266
    %v269 = vunpack.c.l.s4 1966171168
    %v270 = vunpack.c.0.s8 %v269
    %v271 = vlaneseq
    %v272 = vshrl.u32 %v271, 7
    %v273 = vsub.s32 %v270, %v272
    %v274 = vrot.slane %v260, %v273
    %v277 = vadd.f32 %v238, %v267
    %v278 = vadd.f32 %v239, %v274
    %279 = vrot.lane.b32.xlu0 %v189, 112
    %v280 = vpop.permute.xlu0 %279
    %281 = vrot.lane.b32.xlu0 %v196, 112
    %v282 = vpop.permute.xlu0 %281
    %vm283 = vcmp.lt.s32.totalorder %v204, 112
    %v284 = vsel %vm283, %v280, %v282
    %v285 = vsel %vm283, %v282, %v280
    %v286 = vstv %s86
    %v287 = vmul.f32 %v284, %v286
    %v288 = vmul.f32 %v285, %v286
    %v291 = vcombine.low %v287, %v288
    %v293 = vunpack.c.l.s4 1966171168
    %v294 = vunpack.c.0.s8 %v293
    %v295 = vlaneseq
    %v296 = vshrl.u32 %v295, 7
    %v297 = vsub.s32 %v294, %v296
    %v298 = vrot.slane %v291, %v297
    %v299 = vcombine.high %v298, %v298
    %v301 = vunpack.c.l.s4 1966171168
    %v302 = vunpack.c.0.s8 %v301
    %v303 = vlaneseq
    %v304 = vshrl.u32 %v303, 7
    %v305 = vsub.s32 %v302, %v304
    %v306 = vrot.slane %v298, %v305
    %v308 = vunpack.c.l.s4 1966171168
    %v309 = vunpack.c.0.s8 %v308
    %v310 = vlaneseq
    %v311 = vshrl.u32 %v310, 7
    %v312 = vsub.s32 %v309, %v311
    %v313 = vrot.slane %v299, %v312
    %v316 = vadd.f32 %v277, %v306
    %v317 = vadd.f32 %v278, %v313
    %318 = vrot.lane.b32.xlu0 %v189, 111
    %v319 = vpop.permute.xlu0 %318
    %320 = vrot.lane.b32.xlu0 %v196, 111
    %v321 = vpop.permute.xlu0 %320
    %vm322 = vcmp.lt.s32.totalorder %v204, 111
    %v323 = vsel %vm322, %v319, %v321
    %v324 = vsel %vm322, %v321, %v319
    %v325 = vstv %s87
    %v326 = vmul.f32 %v323, %v325
    %v327 = vmul.f32 %v324, %v325
    %v330 = vcombine.low %v326, %v327
    %v332 = vunpack.c.l.s4 1966171168
    %v333 = vunpack.c.0.s8 %v332
    %v334 = vlaneseq
    %v335 = vshrl.u32 %v334, 7
    %v336 = vsub.s32 %v333, %v335
    %v337 = vrot.slane %v330, %v336
    %v338 = vcombine.high %v337, %v337
    %v340 = vunpack.c.l.s4 1966171168
    %v341 = vunpack.c.0.s8 %v340
    %v342 = vlaneseq
    %v343 = vshrl.u32 %v342, 7
    %v344 = vsub.s32 %v341, %v343
    %v345 = vrot.slane %v337, %v344
    %v347 = vunpack.c.l.s4 1966171168
    %v348 = vunpack.c.0.s8 %v347
    %v349 = vlaneseq
    %v350 = vshrl.u32 %v349, 7
    %v351 = vsub.s32 %v348, %v350
    %v352 = vrot.slane %v338, %v351
    %v355 = vadd.f32 %v316, %v345
    %v356 = vadd.f32 %v317, %v352
    %357 = vrot.lane.b32.xlu0 %v189, 110
    %v358 = vpop.permute.xlu0 %357
    %359 = vrot.lane.b32.xlu0 %v196, 110
    %v360 = vpop.permute.xlu0 %359
    %vm361 = vcmp.lt.s32.totalorder %v204, 110
    %v362 = vsel %vm361, %v358, %v360
    %v363 = vsel %vm361, %v360, %v358
    %v364 = vstv %s88
    %v365 = vmul.f32 %v362, %v364
    %v366 = vmul.f32 %v363, %v364
    %v369 = vcombine.low %v365, %v366
    %v371 = vunpack.c.l.s4 1966171168
    %v372 = vunpack.c.0.s8 %v371
    %v373 = vlaneseq
    %v374 = vshrl.u32 %v373, 7
    %v375 = vsub.s32 %v372, %v374
    %v376 = vrot.slane %v369, %v375
    %v377 = vcombine.high %v376, %v376
    %v379 = vunpack.c.l.s4 1966171168
    %v380 = vunpack.c.0.s8 %v379
    %v381 = vlaneseq
    %v382 = vshrl.u32 %v381, 7
    %v383 = vsub.s32 %v380, %v382
    %v384 = vrot.slane %v376, %v383
    %v386 = vunpack.c.l.s4 1966171168
    %v387 = vunpack.c.0.s8 %v386
    %v388 = vlaneseq
    %v389 = vshrl.u32 %v388, 7
    %v390 = vsub.s32 %v387, %v389
    %v391 = vrot.slane %v377, %v390
    %v394 = vadd.f32 %v355, %v384
    %v395 = vadd.f32 %v356, %v391
    %396 = vrot.lane.b32.xlu0 %v189, 96
    %v397 = vpop.permute.xlu0 %396
    %398 = vrot.lane.b32.xlu0 %v196, 96
    %v399 = vpop.permute.xlu0 %398
    %vm400 = vcmp.lt.s32.totalorder %v204, 96
    %v401 = vsel %vm400, %v397, %v399
    %v402 = vsel %vm400, %v399, %v397
    %v403 = vstv %s89
    %v404 = vmul.f32 %v401, %v403
    %v405 = vmul.f32 %v402, %v403
    %v408 = vcombine.low %v404, %v405
    %v410 = vunpack.c.l.s4 1966171168
    %v411 = vunpack.c.0.s8 %v410
    %v412 = vlaneseq
    %v413 = vshrl.u32 %v412, 7
    %v414 = vsub.s32 %v411, %v413
    %v415 = vrot.slane %v408, %v414
    %v416 = vcombine.high %v415, %v415
    %v418 = vunpack.c.l.s4 1966171168
    %v419 = vunpack.c.0.s8 %v418
    %v420 = vlaneseq
    %v421 = vshrl.u32 %v420, 7
    %v422 = vsub.s32 %v419, %v421
    %v423 = vrot.slane %v415, %v422
    %v425 = vunpack.c.l.s4 1966171168
    %v426 = vunpack.c.0.s8 %v425
    %v427 = vlaneseq
    %v428 = vshrl.u32 %v427, 7
    %v429 = vsub.s32 %v426, %v428
    %v430 = vrot.slane %v416, %v429
    %v433 = vadd.f32 %v394, %v423
    %v434 = vadd.f32 %v395, %v430
    %435 = vrot.lane.b32.xlu0 %v189, 95
    %v436 = vpop.permute.xlu0 %435
    %437 = vrot.lane.b32.xlu0 %v196, 95
    %v438 = vpop.permute.xlu0 %437
    %vm439 = vcmp.lt.s32.totalorder %v204, 95
    %v440 = vsel %vm439, %v436, %v438
    %v441 = vsel %vm439, %v438, %v436
    %v442 = vstv %s90
    %v443 = vmul.f32 %v440, %v442
    %v444 = vmul.f32 %v441, %v442
    %v447 = vcombine.low %v443, %v444
    %v449 = vunpack.c.l.s4 1966171168
    %v450 = vunpack.c.0.s8 %v449
    %v451 = vlaneseq
    %v452 = vshrl.u32 %v451, 7
    %v453 = vsub.s32 %v450, %v452
    %v454 = vrot.slane %v447, %v453
    %v455 = vcombine.high %v454, %v454
    %v457 = vunpack.c.l.s4 1966171168
    %v458 = vunpack.c.0.s8 %v457
    %v459 = vlaneseq
    %v460 = vshrl.u32 %v459, 7
    %v461 = vsub.s32 %v458, %v460
    %v462 = vrot.slane %v454, %v461
    %v464 = vunpack.c.l.s4 1966171168
    %v465 = vunpack.c.0.s8 %v464
    %v466 = vlaneseq
    %v467 = vshrl.u32 %v466, 7
    %v468 = vsub.s32 %v465, %v467
    %v469 = vrot.slane %v455, %v468
    %v472 = vadd.f32 %v433, %v462
    %v473 = vadd.f32 %v434, %v469
    %474 = vrot.lane.b32.xlu0 %v189, 94
    %v475 = vpop.permute.xlu0 %474
    %476 = vrot.lane.b32.xlu0 %v196, 94
    %v477 = vpop.permute.xlu0 %476
    %vm478 = vcmp.lt.s32.totalorder %v204, 94
    %v479 = vsel %vm478, %v475, %v477
    %v480 = vsel %vm478, %v477, %v475
    %v481 = vstv %s91
    %v482 = vmul.f32 %v479, %v481
    %v483 = vmul.f32 %v480, %v481
    %v486 = vcombine.low %v482, %v483
    %v488 = vunpack.c.l.s4 1966171168
    %v489 = vunpack.c.0.s8 %v488
    %v490 = vlaneseq
    %v491 = vshrl.u32 %v490, 7
    %v492 = vsub.s32 %v489, %v491
    %v493 = vrot.slane %v486, %v492
    %v494 = vcombine.high %v493, %v493
    %v496 = vunpack.c.l.s4 1966171168
    %v497 = vunpack.c.0.s8 %v496
    %v498 = vlaneseq
    %v499 = vshrl.u32 %v498, 7
    %v500 = vsub.s32 %v497, %v499
    %v501 = vrot.slane %v493, %v500
    %v503 = vunpack.c.l.s4 1966171168
    %v504 = vunpack.c.0.s8 %v503
    %v505 = vlaneseq
    %v506 = vshrl.u32 %v505, 7
    %v507 = vsub.s32 %v504, %v506
    %v508 = vrot.slane %v494, %v507
    %v511 = vadd.f32 %v472, %v501
    %v512 = vadd.f32 %v473, %v508
    %v513 = vstv %s119
    %v514 = vadd.f32 %v511, %v513
    %v515 = vadd.f32 %v512, %v513
    %v516 = vmax.f32 %v514, 0.0
    %v517 = vmax.f32 %v515, 0.0
    %s518 = scalar_lea.vmem %s165, 1 [#allocation2]
    %v519 = vld [vmem:[%s518] ss:$4 sm:$0x3]
    %s520 = scalar_lea.vmem %s165, 9 [#allocation2]
    %v521 = vld [vmem:[%s520] ss:$4 sm:$0x3]
    %v522 = vstv %s92
    %v523 = vmul.f32 %v519, %v522
    %v524 = vmul.f32 %v521, %v522
    %v527 = vcombine.low %v519, %v521
    %v529 = vunpack.c.l.s4 1966171168
    %v530 = vunpack.c.0.s8 %v529
    %v531 = vlaneseq
    %v532 = vshrl.u32 %v531, 7
    %v533 = vsub.s32 %v530, %v532
    %v534 = vrot.slane %v527, %v533
    %v535 = vcombine.high %v534, %v534
    %v537 = vunpack.c.l.s4 1966171168
    %v538 = vunpack.c.0.s8 %v537
    %v539 = vlaneseq
    %v540 = vshrl.u32 %v539, 7
    %v541 = vsub.s32 %v538, %v540
    %v542 = vrot.slane %v534, %v541
    %v544 = vunpack.c.l.s4 1966171168
    %v545 = vunpack.c.0.s8 %v544
    %v546 = vlaneseq
    %v547 = vshrl.u32 %v546, 7
    %v548 = vsub.s32 %v545, %v547
    %v549 = vrot.slane %v535, %v548
    %552 = vrot.lane.b32.xlu0 %v542, 127
    %v553 = vpop.permute.xlu0 %552
    %554 = vrot.lane.b32.xlu0 %v549, 127
    %v555 = vpop.permute.xlu0 %554
    %v556 = vsel %vm205, %v553, %v555
    %v557 = vsel %vm205, %v555, %v553
    %v558 = vstv %s93
    %v559 = vmul.f32 %v556, %v558
    %v560 = vmul.f32 %v557, %v558
    %v563 = vcombine.low %v559, %v560
    %v565 = vunpack.c.l.s4 1966171168
    %v566 = vunpack.c.0.s8 %v565
    %v567 = vlaneseq
    %v568 = vshrl.u32 %v567, 7
    %v569 = vsub.s32 %v566, %v568
    %v570 = vrot.slane %v563, %v569
    %v571 = vcombine.high %v570, %v570
    %v573 = vunpack.c.l.s4 1966171168
    %v574 = vunpack.c.0.s8 %v573
    %v575 = vlaneseq
    %v576 = vshrl.u32 %v575, 7
    %v577 = vsub.s32 %v574, %v576
    %v578 = vrot.slane %v570, %v577
    %v580 = vunpack.c.l.s4 1966171168
    %v581 = vunpack.c.0.s8 %v580
    %v582 = vlaneseq
    %v583 = vshrl.u32 %v582, 7
    %v584 = vsub.s32 %v581, %v583
    %v585 = vrot.slane %v571, %v584
    %v588 = vadd.f32 %v523, %v578
    %v589 = vadd.f32 %v524, %v585
    %590 = vrot.lane.b32.xlu0 %v542, 126
    %v591 = vpop.permute.xlu0 %590
    %592 = vrot.lane.b32.xlu0 %v549, 126
    %v593 = vpop.permute.xlu0 %592
    %v594 = vsel %vm244, %v591, %v593
    %v595 = vsel %vm244, %v593, %v591
    %v596 = vstv %s94
    %v597 = vmul.f32 %v594, %v596
    %v598 = vmul.f32 %v595, %v596
    %v601 = vcombine.low %v597, %v598
    %v603 = vunpack.c.l.s4 1966171168
    %v604 = vunpack.c.0.s8 %v603
    %v605 = vlaneseq
    %v606 = vshrl.u32 %v605, 7
    %v607 = vsub.s32 %v604, %v606
    %v608 = vrot.slane %v601, %v607
    %v609 = vcombine.high %v608, %v608
    %v611 = vunpack.c.l.s4 1966171168
    %v612 = vunpack.c.0.s8 %v611
    %v613 = vlaneseq
    %v614 = vshrl.u32 %v613, 7
    %v615 = vsub.s32 %v612, %v614
    %v616 = vrot.slane %v608, %v615
    %v618 = vunpack.c.l.s4 1966171168
    %v619 = vunpack.c.0.s8 %v618
    %v620 = vlaneseq
    %v621 = vshrl.u32 %v620, 7
    %v622 = vsub.s32 %v619, %v621
    %v623 = vrot.slane %v609, %v622
    %v626 = vadd.f32 %v588, %v616
    %v627 = vadd.f32 %v589, %v623
    %628 = vrot.lane.b32.xlu0 %v542, 112
    %v629 = vpop.permute.xlu0 %628
    %630 = vrot.lane.b32.xlu0 %v549, 112
    %v631 = vpop.permute.xlu0 %630
    %v632 = vsel %vm283, %v629, %v631
    %v633 = vsel %vm283, %v631, %v629
    %v634 = vstv %s95
    %v635 = vmul.f32 %v632, %v634
    %v636 = vmul.f32 %v633, %v634
    %v639 = vcombine.low %v635, %v636
    %v641 = vunpack.c.l.s4 1966171168
    %v642 = vunpack.c.0.s8 %v641
    %v643 = vlaneseq
    %v644 = vshrl.u32 %v643, 7
    %v645 = vsub.s32 %v642, %v644
    %v646 = vrot.slane %v639, %v645
    %v647 = vcombine.high %v646, %v646
    %v649 = vunpack.c.l.s4 1966171168
    %v650 = vunpack.c.0.s8 %v649
    %v651 = vlaneseq
    %v652 = vshrl.u32 %v651, 7
    %v653 = vsub.s32 %v650, %v652
    %v654 = vrot.slane %v646, %v653
    %v656 = vunpack.c.l.s4 1966171168
    %v657 = vunpack.c.0.s8 %v656
    %v658 = vlaneseq
    %v659 = vshrl.u32 %v658, 7
    %v660 = vsub.s32 %v657, %v659
    %v661 = vrot.slane %v647, %v660
    %v664 = vadd.f32 %v626, %v654
    %v665 = vadd.f32 %v627, %v661
    %666 = vrot.lane.b32.xlu0 %v542, 111
    %v667 = vpop.permute.xlu0 %666
    %668 = vrot.lane.b32.xlu0 %v549, 111
    %v669 = vpop.permute.xlu0 %668
    %v670 = vsel %vm322, %v667, %v669
    %v671 = vsel %vm322, %v669, %v667
    %v672 = vstv %s96
    %v673 = vmul.f32 %v670, %v672
    %v674 = vmul.f32 %v671, %v672
    %v677 = vcombine.low %v673, %v674
    %v679 = vunpack.c.l.s4 1966171168
    %v680 = vunpack.c.0.s8 %v679
    %v681 = vlaneseq
    %v682 = vshrl.u32 %v681, 7
    %v683 = vsub.s32 %v680, %v682
    %v684 = vrot.slane %v677, %v683
    %v685 = vcombine.high %v684, %v684
    %v687 = vunpack.c.l.s4 1966171168
    %v688 = vunpack.c.0.s8 %v687
    %v689 = vlaneseq
    %v690 = vshrl.u32 %v689, 7
    %v691 = vsub.s32 %v688, %v690
    %v692 = vrot.slane %v684, %v691
    %v694 = vunpack.c.l.s4 1966171168
    %v695 = vunpack.c.0.s8 %v694
    %v696 = vlaneseq
    %v697 = vshrl.u32 %v696, 7
    %v698 = vsub.s32 %v695, %v697
    %v699 = vrot.slane %v685, %v698
    %v702 = vadd.f32 %v664, %v692
    %v703 = vadd.f32 %v665, %v699
    %704 = vrot.lane.b32.xlu0 %v542, 110
    %v705 = vpop.permute.xlu0 %704
    %706 = vrot.lane.b32.xlu0 %v549, 110
    %v707 = vpop.permute.xlu0 %706
    %v708 = vsel %vm361, %v705, %v707
    %v709 = vsel %vm361, %v707, %v705
    %v710 = vstv %s97
    %v711 = vmul.f32 %v708, %v710
    %v712 = vmul.f32 %v709, %v710
    %v715 = vcombine.low %v711, %v712
    %v717 = vunpack.c.l.s4 1966171168
    %v718 = vunpack.c.0.s8 %v717
    %v719 = vlaneseq
    %v720 = vshrl.u32 %v719, 7
    %v721 = vsub.s32 %v718, %v720
    %v722 = vrot.slane %v715, %v721
    %v723 = vcombine.high %v722, %v722
    %v725 = vunpack.c.l.s4 1966171168
    %v726 = vunpack.c.0.s8 %v725
    %v727 = vlaneseq
    %v728 = vshrl.u32 %v727, 7
    %v729 = vsub.s32 %v726, %v728
    %v730 = vrot.slane %v722, %v729
    %v732 = vunpack.c.l.s4 1966171168
    %v733 = vunpack.c.0.s8 %v732
    %v734 = vlaneseq
    %v735 = vshrl.u32 %v734, 7
    %v736 = vsub.s32 %v733, %v735
    %v737 = vrot.slane %v723, %v736
    %v740 = vadd.f32 %v702, %v730
    %v741 = vadd.f32 %v703, %v737
    %742 = vrot.lane.b32.xlu0 %v542, 96
    %v743 = vpop.permute.xlu0 %742
    %744 = vrot.lane.b32.xlu0 %v549, 96
    %v745 = vpop.permute.xlu0 %744
    %v746 = vsel %vm400, %v743, %v745
    %v747 = vsel %vm400, %v745, %v743
    %v748 = vstv %s98
    %v749 = vmul.f32 %v746, %v748
    %v750 = vmul.f32 %v747, %v748
    %v753 = vcombine.low %v749, %v750
    %v755 = vunpack.c.l.s4 1966171168
    %v756 = vunpack.c.0.s8 %v755
    %v757 = vlaneseq
    %v758 = vshrl.u32 %v757, 7
    %v759 = vsub.s32 %v756, %v758
    %v760 = vrot.slane %v753, %v759
    %v761 = vcombine.high %v760, %v760
    %v763 = vunpack.c.l.s4 1966171168
    %v764 = vunpack.c.0.s8 %v763
    %v765 = vlaneseq
    %v766 = vshrl.u32 %v765, 7
    %v767 = vsub.s32 %v764, %v766
    %v768 = vrot.slane %v760, %v767
    %v770 = vunpack.c.l.s4 1966171168
    %v771 = vunpack.c.0.s8 %v770
    %v772 = vlaneseq
    %v773 = vshrl.u32 %v772, 7
    %v774 = vsub.s32 %v771, %v773
    %v775 = vrot.slane %v761, %v774
    %v778 = vadd.f32 %v740, %v768
    %v779 = vadd.f32 %v741, %v775
    %780 = vrot.lane.b32.xlu0 %v542, 95
    %v781 = vpop.permute.xlu0 %780
    %782 = vrot.lane.b32.xlu0 %v549, 95
    %v783 = vpop.permute.xlu0 %782
    %v784 = vsel %vm439, %v781, %v783
    %v785 = vsel %vm439, %v783, %v781
    %v786 = vstv %s99
    %v787 = vmul.f32 %v784, %v786
    %v788 = vmul.f32 %v785, %v786
    %v791 = vcombine.low %v787, %v788
    %v793 = vunpack.c.l.s4 1966171168
    %v794 = vunpack.c.0.s8 %v793
    %v795 = vlaneseq
    %v796 = vshrl.u32 %v795, 7
    %v797 = vsub.s32 %v794, %v796
    %v798 = vrot.slane %v791, %v797
    %v799 = vcombine.high %v798, %v798
    %v801 = vunpack.c.l.s4 1966171168
    %v802 = vunpack.c.0.s8 %v801
    %v803 = vlaneseq
    %v804 = vshrl.u32 %v803, 7
    %v805 = vsub.s32 %v802, %v804
    %v806 = vrot.slane %v798, %v805
    %v808 = vunpack.c.l.s4 1966171168
    %v809 = vunpack.c.0.s8 %v808
    %v810 = vlaneseq
    %v811 = vshrl.u32 %v810, 7
    %v812 = vsub.s32 %v809, %v811
    %v813 = vrot.slane %v799, %v812
    %v816 = vadd.f32 %v778, %v806
    %v817 = vadd.f32 %v779, %v813
    %818 = vrot.lane.b32.xlu0 %v542, 94
    %v819 = vpop.permute.xlu0 %818
    %820 = vrot.lane.b32.xlu0 %v549, 94
    %v821 = vpop.permute.xlu0 %820
    %v822 = vsel %vm478, %v819, %v821
    %v823 = vsel %vm478, %v821, %v819
    %v824 = vstv %s100
    %v825 = vmul.f32 %v822, %v824
    %v826 = vmul.f32 %v823, %v824
    %v829 = vcombine.low %v825, %v826
    %v831 = vunpack.c.l.s4 1966171168
    %v832 = vunpack.c.0.s8 %v831
    %v833 = vlaneseq
    %v834 = vshrl.u32 %v833, 7
    %v835 = vsub.s32 %v832, %v834
    %v836 = vrot.slane %v829, %v835
    %v837 = vcombine.high %v836, %v836
    %v839 = vunpack.c.l.s4 1966171168
    %v840 = vunpack.c.0.s8 %v839
    %v841 = vlaneseq
    %v842 = vshrl.u32 %v841, 7
    %v843 = vsub.s32 %v840, %v842
    %v844 = vrot.slane %v836, %v843
    %v846 = vunpack.c.l.s4 1966171168
    %v847 = vunpack.c.0.s8 %v846
    %v848 = vlaneseq
    %v849 = vshrl.u32 %v848, 7
    %v850 = vsub.s32 %v847, %v849
    %v851 = vrot.slane %v837, %v850
    %v854 = vadd.f32 %v816, %v844
    %v855 = vadd.f32 %v817, %v851
    %v856 = vstv %s120
    %v857 = vadd.f32 %v854, %v856
    %v858 = vadd.f32 %v855, %v856
    %v859 = vmax.f32 %v857, 0.0
    %v860 = vmax.f32 %v858, 0.0
    %s861 = scalar_lea.vmem %s165, 2 [#allocation2]
    %v862 = vld [vmem:[%s861] ss:$4 sm:$0x3]
    %s863 = scalar_lea.vmem %s165, 10 [#allocation2]
    %v864 = vld [vmem:[%s863] ss:$4 sm:$0x3]
    %v865 = vstv %s101
    %v866 = vmul.f32 %v862, %v865
    %v867 = vmul.f32 %v864, %v865
    %v870 = vcombine.low %v862, %v864
    %v872 = vunpack.c.l.s4 1966171168
    %v873 = vunpack.c.0.s8 %v872
    %v874 = vlaneseq
    %v875 = vshrl.u32 %v874, 7
    %v876 = vsub.s32 %v873, %v875
    %v877 = vrot.slane %v870, %v876
    %v878 = vcombine.high %v877, %v877
    %v880 = vunpack.c.l.s4 1966171168
    %v881 = vunpack.c.0.s8 %v880
    %v882 = vlaneseq
    %v883 = vshrl.u32 %v882, 7
    %v884 = vsub.s32 %v881, %v883
    %v885 = vrot.slane %v877, %v884
    %v887 = vunpack.c.l.s4 1966171168
    %v888 = vunpack.c.0.s8 %v887
    %v889 = vlaneseq
    %v890 = vshrl.u32 %v889, 7
    %v891 = vsub.s32 %v888, %v890
    %v892 = vrot.slane %v878, %v891
    %895 = vrot.lane.b32.xlu0 %v885, 127
    %v896 = vpop.permute.xlu0 %895
    %897 = vrot.lane.b32.xlu0 %v892, 127
    %v898 = vpop.permute.xlu0 %897
    %v899 = vsel %vm205, %v896, %v898
    %v900 = vsel %vm205, %v898, %v896
    %v901 = vstv %s102
    %v902 = vmul.f32 %v899, %v901
    %v903 = vmul.f32 %v900, %v901
    %v906 = vcombine.low %v902, %v903
    %v908 = vunpack.c.l.s4 1966171168
    %v909 = vunpack.c.0.s8 %v908
    %v910 = vlaneseq
    %v911 = vshrl.u32 %v910, 7
    %v912 = vsub.s32 %v909, %v911
    %v913 = vrot.slane %v906, %v912
    %v914 = vcombine.high %v913, %v913
    %v916 = vunpack.c.l.s4 1966171168
    %v917 = vunpack.c.0.s8 %v916
    %v918 = vlaneseq
    %v919 = vshrl.u32 %v918, 7
    %v920 = vsub.s32 %v917, %v919
    %v921 = vrot.slane %v913, %v920
    %v923 = vunpack.c.l.s4 1966171168
    %v924 = vunpack.c.0.s8 %v923
    %v925 = vlaneseq
    %v926 = vshrl.u32 %v925, 7
    %v927 = vsub.s32 %v924, %v926
    %v928 = vrot.slane %v914, %v927
    %v931 = vadd.f32 %v866, %v921
    %v932 = vadd.f32 %v867, %v928
    %933 = vrot.lane.b32.xlu0 %v885, 126
    %v934 = vpop.permute.xlu0 %933
    %935 = vrot.lane.b32.xlu0 %v892, 126
    %v936 = vpop.permute.xlu0 %935
    %v937 = vsel %vm244, %v934, %v936
    %v938 = vsel %vm244, %v936, %v934
    %v939 = vstv %s103
    %v940 = vmul.f32 %v937, %v939
    %v941 = vmul.f32 %v938, %v939
    %v944 = vcombine.low %v940, %v941
    %v946 = vunpack.c.l.s4 1966171168
    %v947 = vunpack.c.0.s8 %v946
    %v948 = vlaneseq
    %v949 = vshrl.u32 %v948, 7
    %v950 = vsub.s32 %v947, %v949
    %v951 = vrot.slane %v944, %v950
    %v952 = vcombine.high %v951, %v951
    %v954 = vunpack.c.l.s4 1966171168
    %v955 = vunpack.c.0.s8 %v954
    %v956 = vlaneseq
    %v957 = vshrl.u32 %v956, 7
    %v958 = vsub.s32 %v955, %v957
    %v959 = vrot.slane %v951, %v958
    %v961 = vunpack.c.l.s4 1966171168
    %v962 = vunpack.c.0.s8 %v961
    %v963 = vlaneseq
    %v964 = vshrl.u32 %v963, 7
    %v965 = vsub.s32 %v962, %v964
    %v966 = vrot.slane %v952, %v965
    %v969 = vadd.f32 %v931, %v959
    %v970 = vadd.f32 %v932, %v966
    %971 = vrot.lane.b32.xlu0 %v885, 112
    %v972 = vpop.permute.xlu0 %971
    %973 = vrot.lane.b32.xlu0 %v892, 112
    %v974 = vpop.permute.xlu0 %973
    %v975 = vsel %vm283, %v972, %v974
    %v976 = vsel %vm283, %v974, %v972
    %v977 = vstv %s104
    %v978 = vmul.f32 %v975, %v977
    %v979 = vmul.f32 %v976, %v977
    %v982 = vcombine.low %v978, %v979
    %v984 = vunpack.c.l.s4 1966171168
    %v985 = vunpack.c.0.s8 %v984
    %v986 = vlaneseq
    %v987 = vshrl.u32 %v986, 7
    %v988 = vsub.s32 %v985, %v987
    %v989 = vrot.slane %v982, %v988
    %v990 = vcombine.high %v989, %v989
    %v992 = vunpack.c.l.s4 1966171168
    %v993 = vunpack.c.0.s8 %v992
    %v994 = vlaneseq
    %v995 = vshrl.u32 %v994, 7
    %v996 = vsub.s32 %v993, %v995
    %v997 = vrot.slane %v989, %v996
    %v999 = vunpack.c.l.s4 1966171168
    %v1000 = vunpack.c.0.s8 %v999
    %v1001 = vlaneseq
    %v1002 = vshrl.u32 %v1001, 7
    %v1003 = vsub.s32 %v1000, %v1002
    %v1004 = vrot.slane %v990, %v1003
    %v1007 = vadd.f32 %v969, %v997
    %v1008 = vadd.f32 %v970, %v1004
    %1009 = vrot.lane.b32.xlu0 %v885, 111
    %v1010 = vpop.permute.xlu0 %1009
    %1011 = vrot.lane.b32.xlu0 %v892, 111
    %v1012 = vpop.permute.xlu0 %1011
    %v1013 = vsel %vm322, %v1010, %v1012
    %v1014 = vsel %vm322, %v1012, %v1010
    %v1015 = vstv %s105
    %v1016 = vmul.f32 %v1013, %v1015
    %v1017 = vmul.f32 %v1014, %v1015
    %v1020 = vcombine.low %v1016, %v1017
    %v1022 = vunpack.c.l.s4 1966171168
    %v1023 = vunpack.c.0.s8 %v1022
    %v1024 = vlaneseq
    %v1025 = vshrl.u32 %v1024, 7
    %v1026 = vsub.s32 %v1023, %v1025
    %v1027 = vrot.slane %v1020, %v1026
    %v1028 = vcombine.high %v1027, %v1027
    %v1030 = vunpack.c.l.s4 1966171168
    %v1031 = vunpack.c.0.s8 %v1030
    %v1032 = vlaneseq
    %v1033 = vshrl.u32 %v1032, 7
    %v1034 = vsub.s32 %v1031, %v1033
    %v1035 = vrot.slane %v1027, %v1034
    %v1037 = vunpack.c.l.s4 1966171168
    %v1038 = vunpack.c.0.s8 %v1037
    %v1039 = vlaneseq
    %v1040 = vshrl.u32 %v1039, 7
    %v1041 = vsub.s32 %v1038, %v1040
    %v1042 = vrot.slane %v1028, %v1041
    %v1045 = vadd.f32 %v1007, %v1035
    %v1046 = vadd.f32 %v1008, %v1042
    %1047 = vrot.lane.b32.xlu0 %v885, 110
    %v1048 = vpop.permute.xlu0 %1047
    %1049 = vrot.lane.b32.xlu0 %v892, 110
    %v1050 = vpop.permute.xlu0 %1049
    %v1051 = vsel %vm361, %v1048, %v1050
    %v1052 = vsel %vm361, %v1050, %v1048
    %v1053 = vstv %s106
    %v1054 = vmul.f32 %v1051, %v1053
    %v1055 = vmul.f32 %v1052, %v1053
    %v1058 = vcombine.low %v1054, %v1055
    %v1060 = vunpack.c.l.s4 1966171168
    %v1061 = vunpack.c.0.s8 %v1060
    %v1062 = vlaneseq
    %v1063 = vshrl.u32 %v1062, 7
    %v1064 = vsub.s32 %v1061, %v1063
    %v1065 = vrot.slane %v1058, %v1064
    %v1066 = vcombine.high %v1065, %v1065
    %v1068 = vunpack.c.l.s4 1966171168
    %v1069 = vunpack.c.0.s8 %v1068
    %v1070 = vlaneseq
    %v1071 = vshrl.u32 %v1070, 7
    %v1072 = vsub.s32 %v1069, %v1071
    %v1073 = vrot.slane %v1065, %v1072
    %v1075 = vunpack.c.l.s4 1966171168
    %v1076 = vunpack.c.0.s8 %v1075
    %v1077 = vlaneseq
    %v1078 = vshrl.u32 %v1077, 7
    %v1079 = vsub.s32 %v1076, %v1078
    %v1080 = vrot.slane %v1066, %v1079
    %v1083 = vadd.f32 %v1045, %v1073
    %v1084 = vadd.f32 %v1046, %v1080
    %1085 = vrot.lane.b32.xlu0 %v885, 96
    %v1086 = vpop.permute.xlu0 %1085
    %1087 = vrot.lane.b32.xlu0 %v892, 96
    %v1088 = vpop.permute.xlu0 %1087
    %v1089 = vsel %vm400, %v1086, %v1088
    %v1090 = vsel %vm400, %v1088, %v1086
    %v1091 = vstv %s107
    %v1092 = vmul.f32 %v1089, %v1091
    %v1093 = vmul.f32 %v1090, %v1091
    %v1096 = vcombine.low %v1092, %v1093
    %v1098 = vunpack.c.l.s4 1966171168
    %v1099 = vunpack.c.0.s8 %v1098
    %v1100 = vlaneseq
    %v1101 = vshrl.u32 %v1100, 7
    %v1102 = vsub.s32 %v1099, %v1101
    %v1103 = vrot.slane %v1096, %v1102
    %v1104 = vcombine.high %v1103, %v1103
    %v1106 = vunpack.c.l.s4 1966171168
    %v1107 = vunpack.c.0.s8 %v1106
    %v1108 = vlaneseq
    %v1109 = vshrl.u32 %v1108, 7
    %v1110 = vsub.s32 %v1107, %v1109
    %v1111 = vrot.slane %v1103, %v1110
    %v1113 = vunpack.c.l.s4 1966171168
    %v1114 = vunpack.c.0.s8 %v1113
    %v1115 = vlaneseq
    %v1116 = vshrl.u32 %v1115, 7
    %v1117 = vsub.s32 %v1114, %v1116
    %v1118 = vrot.slane %v1104, %v1117
    %v1121 = vadd.f32 %v1083, %v1111
    %v1122 = vadd.f32 %v1084, %v1118
    %1123 = vrot.lane.b32.xlu0 %v885, 95
    %v1124 = vpop.permute.xlu0 %1123
    %1125 = vrot.lane.b32.xlu0 %v892, 95
    %v1126 = vpop.permute.xlu0 %1125
    %v1127 = vsel %vm439, %v1124, %v1126
    %v1128 = vsel %vm439, %v1126, %v1124
    %v1129 = vstv %s108
    %v1130 = vmul.f32 %v1127, %v1129
    %v1131 = vmul.f32 %v1128, %v1129
    %v1134 = vcombine.low %v1130, %v1131
    %v1136 = vunpack.c.l.s4 1966171168
    %v1137 = vunpack.c.0.s8 %v1136
    %v1138 = vlaneseq
    %v1139 = vshrl.u32 %v1138, 7
    %v1140 = vsub.s32 %v1137, %v1139
    %v1141 = vrot.slane %v1134, %v1140
    %v1142 = vcombine.high %v1141, %v1141
    %v1144 = vunpack.c.l.s4 1966171168
    %v1145 = vunpack.c.0.s8 %v1144
    %v1146 = vlaneseq
    %v1147 = vshrl.u32 %v1146, 7
    %v1148 = vsub.s32 %v1145, %v1147
    %v1149 = vrot.slane %v1141, %v1148
    %v1151 = vunpack.c.l.s4 1966171168
    %v1152 = vunpack.c.0.s8 %v1151
    %v1153 = vlaneseq
    %v1154 = vshrl.u32 %v1153, 7
    %v1155 = vsub.s32 %v1152, %v1154
    %v1156 = vrot.slane %v1142, %v1155
    %v1159 = vadd.f32 %v1121, %v1149
    %v1160 = vadd.f32 %v1122, %v1156
    %1161 = vrot.lane.b32.xlu0 %v885, 94
    %v1162 = vpop.permute.xlu0 %1161
    %1163 = vrot.lane.b32.xlu0 %v892, 94
    %v1164 = vpop.permute.xlu0 %1163
    %v1165 = vsel %vm478, %v1162, %v1164
    %v1166 = vsel %vm478, %v1164, %v1162
    %v1167 = vstv %s109
    %v1168 = vmul.f32 %v1165, %v1167
    %v1169 = vmul.f32 %v1166, %v1167
    %v1172 = vcombine.low %v1168, %v1169
    %v1174 = vunpack.c.l.s4 1966171168
    %v1175 = vunpack.c.0.s8 %v1174
    %v1176 = vlaneseq
    %v1177 = vshrl.u32 %v1176, 7
    %v1178 = vsub.s32 %v1175, %v1177
    %v1179 = vrot.slane %v1172, %v1178
    %v1180 = vcombine.high %v1179, %v1179
    %v1182 = vunpack.c.l.s4 1966171168
    %v1183 = vunpack.c.0.s8 %v1182
    %v1184 = vlaneseq
    %v1185 = vshrl.u32 %v1184, 7
    %v1186 = vsub.s32 %v1183, %v1185
    %v1187 = vrot.slane %v1179, %v1186
    %v1189 = vunpack.c.l.s4 1966171168
    %v1190 = vunpack.c.0.s8 %v1189
    %v1191 = vlaneseq
    %v1192 = vshrl.u32 %v1191, 7
    %v1193 = vsub.s32 %v1190, %v1192
    %v1194 = vrot.slane %v1180, %v1193
    %v1197 = vadd.f32 %v1159, %v1187
    %v1198 = vadd.f32 %v1160, %v1194
    %v1199 = vstv %s121
    %v1200 = vadd.f32 %v1197, %v1199
    %v1201 = vadd.f32 %v1198, %v1199
    %v1202 = vmax.f32 %v1200, 0.0
    %v1203 = vmax.f32 %v1201, 0.0
    %s1204 = scalar_lea.vmem %s165, 3 [#allocation2]
    %v1205 = vld [vmem:[%s1204] ss:$4 sm:$0x3]
    %s1206 = scalar_lea.vmem %s165, 11 [#allocation2]
    %v1207 = vld [vmem:[%s1206] ss:$4 sm:$0x3]
    %v1208 = vstv %s110
    %v1209 = vmul.f32 %v1205, %v1208
    %v1210 = vmul.f32 %v1207, %v1208
    %v1213 = vcombine.low %v1205, %v1207
    %v1215 = vunpack.c.l.s4 1966171168
    %v1216 = vunpack.c.0.s8 %v1215
    %v1217 = vlaneseq
    %v1218 = vshrl.u32 %v1217, 7
    %v1219 = vsub.s32 %v1216, %v1218
    %v1220 = vrot.slane %v1213, %v1219
    %v1221 = vcombine.high %v1220, %v1220
    %v1223 = vunpack.c.l.s4 1966171168
    %v1224 = vunpack.c.0.s8 %v1223
    %v1225 = vlaneseq
    %v1226 = vshrl.u32 %v1225, 7
    %v1227 = vsub.s32 %v1224, %v1226
    %v1228 = vrot.slane %v1220, %v1227
    %v1230 = vunpack.c.l.s4 1966171168
    %v1231 = vunpack.c.0.s8 %v1230
    %v1232 = vlaneseq
    %v1233 = vshrl.u32 %v1232, 7
    %v1234 = vsub.s32 %v1231, %v1233
    %v1235 = vrot.slane %v1221, %v1234
    %1238 = vrot.lane.b32.xlu0 %v1228, 127
    %v1239 = vpop.permute.xlu0 %1238
    %1240 = vrot.lane.b32.xlu0 %v1235, 127
    %v1241 = vpop.permute.xlu0 %1240
    %v1242 = vsel %vm205, %v1239, %v1241
    %v1243 = vsel %vm205, %v1241, %v1239
    %v1244 = vstv %s111
    %v1245 = vmul.f32 %v1242, %v1244
    %v1246 = vmul.f32 %v1243, %v1244
    %v1249 = vcombine.low %v1245, %v1246
    %v1251 = vunpack.c.l.s4 1966171168
    %v1252 = vunpack.c.0.s8 %v1251
    %v1253 = vlaneseq
    %v1254 = vshrl.u32 %v1253, 7
    %v1255 = vsub.s32 %v1252, %v1254
    %v1256 = vrot.slane %v1249, %v1255
    %v1257 = vcombine.high %v1256, %v1256
    %v1259 = vunpack.c.l.s4 1966171168
    %v1260 = vunpack.c.0.s8 %v1259
    %v1261 = vlaneseq
    %v1262 = vshrl.u32 %v1261, 7
    %v1263 = vsub.s32 %v1260, %v1262
    %v1264 = vrot.slane %v1256, %v1263
    %v1266 = vunpack.c.l.s4 1966171168
    %v1267 = vunpack.c.0.s8 %v1266
    %v1268 = vlaneseq
    %v1269 = vshrl.u32 %v1268, 7
    %v1270 = vsub.s32 %v1267, %v1269
    %v1271 = vrot.slane %v1257, %v1270
    %v1274 = vadd.f32 %v1209, %v1264
    %v1275 = vadd.f32 %v1210, %v1271
    %1276 = vrot.lane.b32.xlu0 %v1228, 126
    %v1277 = vpop.permute.xlu0 %1276
    %1278 = vrot.lane.b32.xlu0 %v1235, 126
    %v1279 = vpop.permute.xlu0 %1278
    %v1280 = vsel %vm244, %v1277, %v1279
    %v1281 = vsel %vm244, %v1279, %v1277
    %v1282 = vstv %s112
    %v1283 = vmul.f32 %v1280, %v1282
    %v1284 = vmul.f32 %v1281, %v1282
    %v1287 = vcombine.low %v1283, %v1284
    %v1289 = vunpack.c.l.s4 1966171168
    %v1290 = vunpack.c.0.s8 %v1289
    %v1291 = vlaneseq
    %v1292 = vshrl.u32 %v1291, 7
    %v1293 = vsub.s32 %v1290, %v1292
    %v1294 = vrot.slane %v1287, %v1293
    %v1295 = vcombine.high %v1294, %v1294
    %v1297 = vunpack.c.l.s4 1966171168
    %v1298 = vunpack.c.0.s8 %v1297
    %v1299 = vlaneseq
    %v1300 = vshrl.u32 %v1299, 7
    %v1301 = vsub.s32 %v1298, %v1300
    %v1302 = vrot.slane %v1294, %v1301
    %v1304 = vunpack.c.l.s4 1966171168
    %v1305 = vunpack.c.0.s8 %v1304
    %v1306 = vlaneseq
    %v1307 = vshrl.u32 %v1306, 7
    %v1308 = vsub.s32 %v1305, %v1307
    %v1309 = vrot.slane %v1295, %v1308
    %v1312 = vadd.f32 %v1274, %v1302
    %v1313 = vadd.f32 %v1275, %v1309
    %1314 = vrot.lane.b32.xlu0 %v1228, 112
    %v1315 = vpop.permute.xlu0 %1314
    %1316 = vrot.lane.b32.xlu0 %v1235, 112
    %v1317 = vpop.permute.xlu0 %1316
    %v1318 = vsel %vm283, %v1315, %v1317
    %v1319 = vsel %vm283, %v1317, %v1315
    %v1320 = vstv %s113
    %v1321 = vmul.f32 %v1318, %v1320
    %v1322 = vmul.f32 %v1319, %v1320
    %v1325 = vcombine.low %v1321, %v1322
    %v1327 = vunpack.c.l.s4 1966171168
    %v1328 = vunpack.c.0.s8 %v1327
    %v1329 = vlaneseq
    %v1330 = vshrl.u32 %v1329, 7
    %v1331 = vsub.s32 %v1328, %v1330
    %v1332 = vrot.slane %v1325, %v1331
    %v1333 = vcombine.high %v1332, %v1332
    %v1335 = vunpack.c.l.s4 1966171168
    %v1336 = vunpack.c.0.s8 %v1335
    %v1337 = vlaneseq
    %v1338 = vshrl.u32 %v1337, 7
    %v1339 = vsub.s32 %v1336, %v1338
    %v1340 = vrot.slane %v1332, %v1339
    %v1342 = vunpack.c.l.s4 1966171168
    %v1343 = vunpack.c.0.s8 %v1342
    %v1344 = vlaneseq
    %v1345 = vshrl.u32 %v1344, 7
    %v1346 = vsub.s32 %v1343, %v1345
    %v1347 = vrot.slane %v1333, %v1346
    %v1350 = vadd.f32 %v1312, %v1340
    %v1351 = vadd.f32 %v1313, %v1347
    %1352 = vrot.lane.b32.xlu0 %v1228, 111
    %v1353 = vpop.permute.xlu0 %1352
    %1354 = vrot.lane.b32.xlu0 %v1235, 111
    %v1355 = vpop.permute.xlu0 %1354
    %v1356 = vsel %vm322, %v1353, %v1355
    %v1357 = vsel %vm322, %v1355, %v1353
    %v1358 = vstv %s114
    %v1359 = vmul.f32 %v1356, %v1358
    %v1360 = vmul.f32 %v1357, %v1358
    %v1363 = vcombine.low %v1359, %v1360
    %v1365 = vunpack.c.l.s4 1966171168
    %v1366 = vunpack.c.0.s8 %v1365
    %v1367 = vlaneseq
    %v1368 = vshrl.u32 %v1367, 7
    %v1369 = vsub.s32 %v1366, %v1368
    %v1370 = vrot.slane %v1363, %v1369
    %v1371 = vcombine.high %v1370, %v1370
    %v1373 = vunpack.c.l.s4 1966171168
    %v1374 = vunpack.c.0.s8 %v1373
    %v1375 = vlaneseq
    %v1376 = vshrl.u32 %v1375, 7
    %v1377 = vsub.s32 %v1374, %v1376
    %v1378 = vrot.slane %v1370, %v1377
    %v1380 = vunpack.c.l.s4 1966171168
    %v1381 = vunpack.c.0.s8 %v1380
    %v1382 = vlaneseq
    %v1383 = vshrl.u32 %v1382, 7
    %v1384 = vsub.s32 %v1381, %v1383
    %v1385 = vrot.slane %v1371, %v1384
    %v1388 = vadd.f32 %v1350, %v1378
    %v1389 = vadd.f32 %v1351, %v1385
    %1390 = vrot.lane.b32.xlu0 %v1228, 110
    %v1391 = vpop.permute.xlu0 %1390
    %1392 = vrot.lane.b32.xlu0 %v1235, 110
    %v1393 = vpop.permute.xlu0 %1392
    %v1394 = vsel %vm361, %v1391, %v1393
    %v1395 = vsel %vm361, %v1393, %v1391
    %v1396 = vstv %s115
    %v1397 = vmul.f32 %v1394, %v1396
    %v1398 = vmul.f32 %v1395, %v1396
    %v1401 = vcombine.low %v1397, %v1398
    %v1403 = vunpack.c.l.s4 1966171168
    %v1404 = vunpack.c.0.s8 %v1403
    %v1405 = vlaneseq
    %v1406 = vshrl.u32 %v1405, 7
    %v1407 = vsub.s32 %v1404, %v1406
    %v1408 = vrot.slane %v1401, %v1407
    %v1409 = vcombine.high %v1408, %v1408
    %v1411 = vunpack.c.l.s4 1966171168
    %v1412 = vunpack.c.0.s8 %v1411
    %v1413 = vlaneseq
    %v1414 = vshrl.u32 %v1413, 7
    %v1415 = vsub.s32 %v1412, %v1414
    %v1416 = vrot.slane %v1408, %v1415
    %v1418 = vunpack.c.l.s4 1966171168
    %v1419 = vunpack.c.0.s8 %v1418
    %v1420 = vlaneseq
    %v1421 = vshrl.u32 %v1420, 7
    %v1422 = vsub.s32 %v1419, %v1421
    %v1423 = vrot.slane %v1409, %v1422
    %v1426 = vadd.f32 %v1388, %v1416
    %v1427 = vadd.f32 %v1389, %v1423
    %1428 = vrot.lane.b32.xlu0 %v1228, 96
    %v1429 = vpop.permute.xlu0 %1428
    %1430 = vrot.lane.b32.xlu0 %v1235, 96
    %v1431 = vpop.permute.xlu0 %1430
    %v1432 = vsel %vm400, %v1429, %v1431
    %v1433 = vsel %vm400, %v1431, %v1429
    %v1434 = vstv %s116
    %v1435 = vmul.f32 %v1432, %v1434
    %v1436 = vmul.f32 %v1433, %v1434
    %v1439 = vcombine.low %v1435, %v1436
    %v1441 = vunpack.c.l.s4 1966171168
    %v1442 = vunpack.c.0.s8 %v1441
    %v1443 = vlaneseq
    %v1444 = vshrl.u32 %v1443, 7
    %v1445 = vsub.s32 %v1442, %v1444
    %v1446 = vrot.slane %v1439, %v1445
    %v1447 = vcombine.high %v1446, %v1446
    %v1449 = vunpack.c.l.s4 1966171168
    %v1450 = vunpack.c.0.s8 %v1449
    %v1451 = vlaneseq
    %v1452 = vshrl.u32 %v1451, 7
    %v1453 = vsub.s32 %v1450, %v1452
    %v1454 = vrot.slane %v1446, %v1453
    %v1456 = vunpack.c.l.s4 1966171168
    %v1457 = vunpack.c.0.s8 %v1456
    %v1458 = vlaneseq
    %v1459 = vshrl.u32 %v1458, 7
    %v1460 = vsub.s32 %v1457, %v1459
    %v1461 = vrot.slane %v1447, %v1460
    %v1464 = vadd.f32 %v1426, %v1454
    %v1465 = vadd.f32 %v1427, %v1461
    %1466 = vrot.lane.b32.xlu0 %v1228, 95
    %v1467 = vpop.permute.xlu0 %1466
    %1468 = vrot.lane.b32.xlu0 %v1235, 95
    %v1469 = vpop.permute.xlu0 %1468
    %v1470 = vsel %vm439, %v1467, %v1469
    %v1471 = vsel %vm439, %v1469, %v1467
    %v1472 = vstv %s117
    %v1473 = vmul.f32 %v1470, %v1472
    %v1474 = vmul.f32 %v1471, %v1472
    %v1477 = vcombine.low %v1473, %v1474
    %v1479 = vunpack.c.l.s4 1966171168
    %v1480 = vunpack.c.0.s8 %v1479
    %v1481 = vlaneseq
    %v1482 = vshrl.u32 %v1481, 7
    %v1483 = vsub.s32 %v1480, %v1482
    %v1484 = vrot.slane %v1477, %v1483
    %v1485 = vcombine.high %v1484, %v1484
    %v1487 = vunpack.c.l.s4 1966171168
    %v1488 = vunpack.c.0.s8 %v1487
    %v1489 = vlaneseq
    %v1490 = vshrl.u32 %v1489, 7
    %v1491 = vsub.s32 %v1488, %v1490
    %v1492 = vrot.slane %v1484, %v1491
    %v1494 = vunpack.c.l.s4 1966171168
    %v1495 = vunpack.c.0.s8 %v1494
    %v1496 = vlaneseq
    %v1497 = vshrl.u32 %v1496, 7
    %v1498 = vsub.s32 %v1495, %v1497
    %v1499 = vrot.slane %v1485, %v1498
    %v1502 = vadd.f32 %v1464, %v1492
    %v1503 = vadd.f32 %v1465, %v1499
    %1504 = vrot.lane.b32.xlu0 %v1228, 94
    %v1505 = vpop.permute.xlu0 %1504
    %1506 = vrot.lane.b32.xlu0 %v1235, 94
    %v1507 = vpop.permute.xlu0 %1506
    %v1508 = vsel %vm478, %v1505, %v1507
    %v1509 = vsel %vm478, %v1507, %v1505
    %v1510 = vstv %s118
    %v1511 = vmul.f32 %v1508, %v1510
    %v1512 = vmul.f32 %v1509, %v1510
    %v1515 = vcombine.low %v1511, %v1512
    %v1517 = vunpack.c.l.s4 1966171168
    %v1518 = vunpack.c.0.s8 %v1517
    %v1519 = vlaneseq
    %v1520 = vshrl.u32 %v1519, 7
    %v1521 = vsub.s32 %v1518, %v1520
    %v1522 = vrot.slane %v1515, %v1521
    %v1523 = vcombine.high %v1522, %v1522
    %v1525 = vunpack.c.l.s4 1966171168
    %v1526 = vunpack.c.0.s8 %v1525
    %v1527 = vlaneseq
    %v1528 = vshrl.u32 %v1527, 7
    %v1529 = vsub.s32 %v1526, %v1528
    %v1530 = vrot.slane %v1522, %v1529
    %v1532 = vunpack.c.l.s4 1966171168
    %v1533 = vunpack.c.0.s8 %v1532
    %v1534 = vlaneseq
    %v1535 = vshrl.u32 %v1534, 7
    %v1536 = vsub.s32 %v1533, %v1535
    %v1537 = vrot.slane %v1523, %v1536
    %v1540 = vadd.f32 %v1502, %v1530
    %v1541 = vadd.f32 %v1503, %v1537
    %v1542 = vstv %s122
    %v1543 = vadd.f32 %v1540, %v1542
    %v1544 = vadd.f32 %v1541, %v1542
    %v1545 = vmax.f32 %v1543, 0.0
    %v1546 = vmax.f32 %v1544, 0.0
    %v1547 = vstv %s123
    %v1548 = vmul.f32 %v516, %v1547
    %v1549 = vmul.f32 %v517, %v1547
    %v1550 = vstv %s124
    %v1551 = vmul.f32 %v859, %v1550
    %v1552 = vmul.f32 %v860, %v1550
    %v1553 = vadd.f32 %v1548, %v1551
    %v1554 = vadd.f32 %v1549, %v1552
    %v1555 = vstv %s125
    %v1556 = vmul.f32 %v1202, %v1555
    %v1557 = vmul.f32 %v1203, %v1555
    %v1558 = vadd.f32 %v1553, %v1556
    %v1559 = vadd.f32 %v1554, %v1557
    %v1560 = vstv %s126
    %v1561 = vmul.f32 %v1545, %v1560
    %v1562 = vmul.f32 %v1546, %v1560
    %v1563 = vadd.f32 %v1558, %v1561
    %v1564 = vadd.f32 %v1559, %v1562
    %v1565 = vstv %s155
    %v1566 = vadd.f32 %v1563, %v1565
    %v1567 = vadd.f32 %v1564, %v1565
    %v1568 = vmax.f32 %v1566, 0.0
    %v1569 = vmax.f32 %v1567, 0.0
    %s1570 = smul.addr %s163, 8
    %s1571 = scalar_lea.vmem [#allocation12], %s1570
    %v1572 = vlaneseq
    %vm1573 = vcmp.ge.s32.totalorder %v1572, 0
    %vm1574 = vcmp.lt.s32.totalorder %v1572, 256
    %vm1575 = vmand %vm1573, %vm1574
    %1576 = vst.msk [vmem:[%s1571] ss:$8 sm:$0x3] %vm1575, %v1568
    %1577 = vst.msk [vmem:[%s1571] ss:$8 sm:$0x0] %vm1575, %v1568
    %s1578 = scalar_lea.vmem %s1571, 16 [#allocation12]
    %1579 = vst.msk [vmem:[%s1578] ss:$8 sm:$0x3] %vm1575, %v1569
    %1580 = vst.msk [vmem:[%s1578] ss:$8 sm:$0x0] %vm1575, %v1569
    %v1581 = vstv %s127
    %v1582 = vmul.f32 %v516, %v1581
    %v1583 = vmul.f32 %v517, %v1581
    %v1584 = vstv %s128
    %v1585 = vmul.f32 %v859, %v1584
    %v1586 = vmul.f32 %v860, %v1584
    %v1587 = vadd.f32 %v1582, %v1585
    %v1588 = vadd.f32 %v1583, %v1586
    %v1589 = vstv %s129
    %v1590 = vmul.f32 %v1202, %v1589
    %v1591 = vmul.f32 %v1203, %v1589
    %v1592 = vadd.f32 %v1587, %v1590
    %v1593 = vadd.f32 %v1588, %v1591
    %v1594 = vstv %s130
    %v1595 = vmul.f32 %v1545, %v1594
    %v1596 = vmul.f32 %v1546, %v1594
    %v1597 = vadd.f32 %v1592, %v1595
    %v1598 = vadd.f32 %v1593, %v1596
    %v1599 = vstv %s156
    %v1600 = vadd.f32 %v1597, %v1599
    %v1601 = vadd.f32 %v1598, %v1599
    %v1602 = vmax.f32 %v1600, 0.0
    %v1603 = vmax.f32 %v1601, 0.0
    %s1604 = scalar_lea.vmem %s1571, 1 [#allocation12]
    %1605 = vst.msk [vmem:[%s1604] ss:$8 sm:$0x3] %vm1575, %v1602
    %1606 = vst.msk [vmem:[%s1604] ss:$8 sm:$0x0] %vm1575, %v1602
    %s1607 = scalar_lea.vmem %s1571, 17 [#allocation12]
    %1608 = vst.msk [vmem:[%s1607] ss:$8 sm:$0x3] %vm1575, %v1603
    %1609 = vst.msk [vmem:[%s1607] ss:$8 sm:$0x0] %vm1575, %v1603
    %v1610 = vstv %s131
    %v1611 = vmul.f32 %v516, %v1610
    %v1612 = vmul.f32 %v517, %v1610
    %v1613 = vstv %s132
    %v1614 = vmul.f32 %v859, %v1613
    %v1615 = vmul.f32 %v860, %v1613
    %v1616 = vadd.f32 %v1611, %v1614
    %v1617 = vadd.f32 %v1612, %v1615
    %v1618 = vstv %s133
    %v1619 = vmul.f32 %v1202, %v1618
    %v1620 = vmul.f32 %v1203, %v1618
    %v1621 = vadd.f32 %v1616, %v1619
    %v1622 = vadd.f32 %v1617, %v1620
    %v1623 = vstv %s134
    %v1624 = vmul.f32 %v1545, %v1623
    %v1625 = vmul.f32 %v1546, %v1623
    %v1626 = vadd.f32 %v1621, %v1624
    %v1627 = vadd.f32 %v1622, %v1625
    %v1628 = vstv %s157
    %v1629 = vadd.f32 %v1626, %v1628
    %v1630 = vadd.f32 %v1627, %v1628
    %v1631 = vmax.f32 %v1629, 0.0
    %v1632 = vmax.f32 %v1630, 0.0
    %s1633 = scalar_lea.vmem %s1571, 2 [#allocation12]
    %1634 = vst.msk [vmem:[%s1633] ss:$8 sm:$0x3] %vm1575, %v1631
    %1635 = vst.msk [vmem:[%s1633] ss:$8 sm:$0x0] %vm1575, %v1631
    %s1636 = scalar_lea.vmem %s1571, 18 [#allocation12]
    %1637 = vst.msk [vmem:[%s1636] ss:$8 sm:$0x3] %vm1575, %v1632
    %1638 = vst.msk [vmem:[%s1636] ss:$8 sm:$0x0] %vm1575, %v1632
    %v1639 = vstv %s135
    %v1640 = vmul.f32 %v516, %v1639
    %v1641 = vmul.f32 %v517, %v1639
    %v1642 = vstv %s136
    %v1643 = vmul.f32 %v859, %v1642
    %v1644 = vmul.f32 %v860, %v1642
    %v1645 = vadd.f32 %v1640, %v1643
    %v1646 = vadd.f32 %v1641, %v1644
    %v1647 = vstv %s137
    %v1648 = vmul.f32 %v1202, %v1647
    %v1649 = vmul.f32 %v1203, %v1647
    %v1650 = vadd.f32 %v1645, %v1648
    %v1651 = vadd.f32 %v1646, %v1649
    %v1652 = vstv %s138
    %v1653 = vmul.f32 %v1545, %v1652
    %v1654 = vmul.f32 %v1546, %v1652
    %v1655 = vadd.f32 %v1650, %v1653
    %v1656 = vadd.f32 %v1651, %v1654
    %v1657 = vstv %s158
    %v1658 = vadd.f32 %v1655, %v1657
    %v1659 = vadd.f32 %v1656, %v1657
    %v1660 = vmax.f32 %v1658, 0.0
    %v1661 = vmax.f32 %v1659, 0.0
    %s1662 = scalar_lea.vmem %s1571, 3 [#allocation12]
    %1663 = vst.msk [vmem:[%s1662] ss:$8 sm:$0x3] %vm1575, %v1660
    %1664 = vst.msk [vmem:[%s1662] ss:$8 sm:$0x0] %vm1575, %v1660
    %s1665 = scalar_lea.vmem %s1571, 19 [#allocation12]
    %1666 = vst.msk [vmem:[%s1665] ss:$8 sm:$0x3] %vm1575, %v1661
    %1667 = vst.msk [vmem:[%s1665] ss:$8 sm:$0x0] %vm1575, %v1661
    %v1668 = vstv %s139
    %v1669 = vmul.f32 %v516, %v1668
    %v1670 = vmul.f32 %v517, %v1668
    %v1671 = vstv %s140
    %v1672 = vmul.f32 %v859, %v1671
    %v1673 = vmul.f32 %v860, %v1671
    %v1674 = vadd.f32 %v1669, %v1672
    %v1675 = vadd.f32 %v1670, %v1673
    %v1676 = vstv %s141
    %v1677 = vmul.f32 %v1202, %v1676
    %v1678 = vmul.f32 %v1203, %v1676
    %v1679 = vadd.f32 %v1674, %v1677
    %v1680 = vadd.f32 %v1675, %v1678
    %v1681 = vstv %s142
    %v1682 = vmul.f32 %v1545, %v1681
    %v1683 = vmul.f32 %v1546, %v1681
    %v1684 = vadd.f32 %v1679, %v1682
    %v1685 = vadd.f32 %v1680, %v1683
    %v1686 = vstv %s159
    %v1687 = vadd.f32 %v1684, %v1686
    %v1688 = vadd.f32 %v1685, %v1686
    %v1689 = vmax.f32 %v1687, 0.0
    %v1690 = vmax.f32 %v1688, 0.0
    %s1691 = scalar_lea.vmem %s1571, 4 [#allocation12]
    %1692 = vst.msk [vmem:[%s1691] ss:$8 sm:$0x3] %vm1575, %v1689
    %1693 = vst.msk [vmem:[%s1691] ss:$8 sm:$0x0] %vm1575, %v1689
    %s1694 = scalar_lea.vmem %s1571, 20 [#allocation12]
    %1695 = vst.msk [vmem:[%s1694] ss:$8 sm:$0x3] %vm1575, %v1690
    %1696 = vst.msk [vmem:[%s1694] ss:$8 sm:$0x0] %vm1575, %v1690
    %v1697 = vstv %s143
    %v1698 = vmul.f32 %v516, %v1697
    %v1699 = vmul.f32 %v517, %v1697
    %v1700 = vstv %s144
    %v1701 = vmul.f32 %v859, %v1700
    %v1702 = vmul.f32 %v860, %v1700
    %v1703 = vadd.f32 %v1698, %v1701
    %v1704 = vadd.f32 %v1699, %v1702
    %v1705 = vstv %s145
    %v1706 = vmul.f32 %v1202, %v1705
    %v1707 = vmul.f32 %v1203, %v1705
    %v1708 = vadd.f32 %v1703, %v1706
    %v1709 = vadd.f32 %v1704, %v1707
    %v1710 = vstv %s146
    %v1711 = vmul.f32 %v1545, %v1710
    %v1712 = vmul.f32 %v1546, %v1710
    %v1713 = vadd.f32 %v1708, %v1711
    %v1714 = vadd.f32 %v1709, %v1712
    %v1715 = vstv %s160
    %v1716 = vadd.f32 %v1713, %v1715
    %v1717 = vadd.f32 %v1714, %v1715
    %v1718 = vmax.f32 %v1716, 0.0
    %v1719 = vmax.f32 %v1717, 0.0
    %s1720 = scalar_lea.vmem %s1571, 5 [#allocation12]
    %1721 = vst.msk [vmem:[%s1720] ss:$8 sm:$0x3] %vm1575, %v1718
    %1722 = vst.msk [vmem:[%s1720] ss:$8 sm:$0x0] %vm1575, %v1718
    %s1723 = scalar_lea.vmem %s1571, 21 [#allocation12]
    %1724 = vst.msk [vmem:[%s1723] ss:$8 sm:$0x3] %vm1575, %v1719
    %1725 = vst.msk [vmem:[%s1723] ss:$8 sm:$0x0] %vm1575, %v1719
    %v1726 = vstv %s147
    %v1727 = vmul.f32 %v516, %v1726
    %v1728 = vmul.f32 %v517, %v1726
    %v1729 = vstv %s148
    %v1730 = vmul.f32 %v859, %v1729
    %v1731 = vmul.f32 %v860, %v1729
    %v1732 = vadd.f32 %v1727, %v1730
    %v1733 = vadd.f32 %v1728, %v1731
    %v1734 = vstv %s149
    %v1735 = vmul.f32 %v1202, %v1734
    %v1736 = vmul.f32 %v1203, %v1734
    %v1737 = vadd.f32 %v1732, %v1735
    %v1738 = vadd.f32 %v1733, %v1736
    %v1739 = vstv %s150
    %v1740 = vmul.f32 %v1545, %v1739
    %v1741 = vmul.f32 %v1546, %v1739
    %v1742 = vadd.f32 %v1737, %v1740
    %v1743 = vadd.f32 %v1738, %v1741
    %v1744 = vstv %s161
    %v1745 = vadd.f32 %v1742, %v1744
    %v1746 = vadd.f32 %v1743, %v1744
    %v1747 = vmax.f32 %v1745, 0.0
    %v1748 = vmax.f32 %v1746, 0.0
    %s1749 = scalar_lea.vmem %s1571, 6 [#allocation12]
    %1750 = vst.msk [vmem:[%s1749] ss:$8 sm:$0x3] %vm1575, %v1747
    %1751 = vst.msk [vmem:[%s1749] ss:$8 sm:$0x0] %vm1575, %v1747
    %s1752 = scalar_lea.vmem %s1571, 22 [#allocation12]
    %1753 = vst.msk [vmem:[%s1752] ss:$8 sm:$0x3] %vm1575, %v1748
    %1754 = vst.msk [vmem:[%s1752] ss:$8 sm:$0x0] %vm1575, %v1748
    %v1755 = vstv %s151
    %v1756 = vmul.f32 %v516, %v1755
    %v1757 = vmul.f32 %v517, %v1755
    %v1758 = vstv %s152
    %v1759 = vmul.f32 %v859, %v1758
    %v1760 = vmul.f32 %v860, %v1758
    %v1761 = vadd.f32 %v1756, %v1759
    %v1762 = vadd.f32 %v1757, %v1760
    %v1763 = vstv %s153
    %v1764 = vmul.f32 %v1202, %v1763
    %v1765 = vmul.f32 %v1203, %v1763
    %v1766 = vadd.f32 %v1761, %v1764
    %v1767 = vadd.f32 %v1762, %v1765
    %v1768 = vstv %s154
    %v1769 = vmul.f32 %v1545, %v1768
    %v1770 = vmul.f32 %v1546, %v1768
    %v1771 = vadd.f32 %v1766, %v1769
    %v1772 = vadd.f32 %v1767, %v1770
    %v1773 = vstv %s162
    %v1774 = vadd.f32 %v1771, %v1773
    %v1775 = vadd.f32 %v1772, %v1773
    %v1776 = vmax.f32 %v1774, 0.0
    %v1777 = vmax.f32 %v1775, 0.0
    %s1778 = scalar_lea.vmem %s1571, 7 [#allocation12]
    %1779 = vst.msk [vmem:[%s1778] ss:$8 sm:$0x3] %vm1575, %v1776
    %1780 = vst.msk [vmem:[%s1778] ss:$8 sm:$0x0] %vm1575, %v1776
    %s1781 = scalar_lea.vmem %s1571, 23 [#allocation12]
    %1782 = vst.msk [vmem:[%s1781] ss:$8 sm:$0x3] %vm1575, %v1777
    %1783 = vst.msk [vmem:[%s1781] ss:$8 sm:$0x0] %vm1575, %v1777
    // Predicated region
    $region42: #{tpu_custom_call.1} parent=1 // pred_check
      _
    $region43: #{tpu_custom_call.1} parent=1 // pred_check_branch
      %1785 = sbr.rel (0) target = $region45
    $region44: #{tpu_custom_call.1} parent=1 // pred_region
      %s1787 = ssub.s32 512, 512
      %1788 = vsyncadd [#allocation4], %s1787
      %s1789 = sshll.u32 [#allocation12], 4
      %s1790 = int_to_ptr.vmem [resolvable:$true] %s1789
      %1795 = dma.vmem_to_hbm [thread:$0]  %s1790, 512, %s5, [#allocation4], 256, 256, 16
    $region45: #{tpu_custom_call.1} parent=1 // pred_fallthru
      _
    // Predicated region
    $region46: #{tpu_custom_call.1} parent=1 // pred_check
      _
    $region47: #{tpu_custom_call.1} parent=1 // pred_check_branch
      %1797 = sbr.rel (0) target = $region49
    $region48: #{tpu_custom_call.1} parent=1 // pred_region
      %1798 = dma.done [#allocation4], 512
    $region49: #{tpu_custom_call.1} parent=1 // pred_fallthru
      _
    %1799 = vsyncpa [#allocation3], 1
    %1800 = vsyncpa [#allocation4], 1
    %1801 = vsyncpa [#allocation5], 1
    %1802 = vsyncpa [#allocation8], 1
    %1803 = vsyncpa [#allocation11], 1

</llo_original>
